<compile_context>
chip_gen: v5e
topology: v5e:2x2
jax: 0.10.0
libtpu: 0.0.40
codegen_flags: <defaults>
</compile_context>

<pallas_src>
import math

import jax
import jax.numpy as jnp
from jax import lax
from jax.experimental import pallas as pl
from jax.experimental.pallas import tpu as pltpu


def _rotary_kernel(inv_freq_ref, cos_ref, sin_ref):
    # inv_freq_ref: (1, half) f32 in VMEM
    # cos_ref/sin_ref: (rows, group*3*dim) VMEM tile; each row holds `group`
    #                  consecutive positions, each laid out [slot0|slot1|slot2].
    rows, width = cos_ref.shape
    half = inv_freq_ref.shape[1]
    dim = 2 * half
    group = width // (3 * dim)

    row0 = pl.program_id(0) * rows
    # Global slab-row index of each in-tile row.  Positions are exact in f32
    # up to ~2^24 (same float behaviour as the PyTorch reference).
    r = lax.broadcasted_iota(jnp.int32, (rows, half), 0) + row0

    inv_freq = inv_freq_ref[...]                                # (1, half)

    ones_blk = jnp.ones((rows, dim), dtype=cos_ref.dtype)       # slot-2 identity
    zeros_blk = jnp.zeros((rows, dim), dtype=sin_ref.dtype)

    # Static unroll over the packed position groups (group is 1/2/4 typically).
    for g in range(group):
        t = (r * group + g).astype(jnp.float32)                 # positions
        freqs = t * inv_freq                                    # (rows, half)
        c = jnp.cos(freqs)                                      # half-width EUP
        s = jnp.sin(freqs)
        # emb = [freqs, freqs] -> only dim-wide values ever live.
        emb_c = jnp.concatenate([c, c], axis=-1).astype(cos_ref.dtype)
        emb_s = jnp.concatenate([s, s], axis=-1).astype(sin_ref.dtype)

        base = g * 3 * dim
        cos_ref[:, base:base + dim] = emb_c                     # slot 0
        cos_ref[:, base + dim:base + 2 * dim] = emb_c           # slot 1 (dup)
        cos_ref[:, base + 2 * dim:base + 3 * dim] = ones_blk    # slot 2 = 1.0
        sin_ref[:, base:base + dim] = emb_s
        sin_ref[:, base + dim:base + 2 * dim] = emb_s
        sin_ref[:, base + 2 * dim:base + 3 * dim] = zeros_blk   # slot 2 = 0.0


def make_inv_freq(dim, base=10000.0):
    # Deterministic parameter init, mirrors the PyTorch __init__.
    return 1.0 / (base ** (jnp.arange(0, dim, 2, dtype=jnp.float32) / dim))


def _seq_dim_semantics(grid_size):
    """Use CORE_PARALLEL on v7x (2 TensorCores/chip) so both cores share the
    store-bound seq loop; plain "parallel" elsewhere (near-no-op, harmless)."""
    core_parallel = getattr(pltpu, "CORE_PARALLEL", None)
    try:
        kind = jax.devices()[0].device_kind.lower()
    except Exception:  # defensive: never let detection break compilation
        kind = ""
    if core_parallel is not None and "v7" in kind and grid_size >= 2:
        return (core_parallel,)
    return ("parallel",)


def rotary_forward(x, inv_freq, seq_dim=1, *, tile_seq=2048, out_dtype=jnp.float32):
    """Returns (cos, sin), each of shape (1, seq_len, 3, 1, dim)."""
    seq_len = int(x.shape[seq_dim])
    half = int(inv_freq.shape[0])
    dim = 2 * half
    width0 = 3 * dim

    # Lane-dense packing: G positions per output row so the slab's lane width
    # is a multiple of 128 (avoids masked vst on HBM writeback).  The final
    # reshape is a pure row-major view regardless of G.
    if width0 % 128 == 0:
        group = 1
    else:
        group = math.lcm(width0, 128) // width0
        if seq_len % group != 0:
            group = 1          # fall back (correct, just masked stores)
    width = group * width0
    seq_rows = seq_len // group

    # Seq tiling (in packed rows); multiple of 8 unless it is the full extent.
    tile_seq = max(int(tile_seq), 1)
    rows_target = max(8, -(-tile_seq // group))       # ceil(tile_seq / group)
    rows_target = -(-rows_target // 8) * 8            # round up to multiple of 8
    ts_rows = seq_rows if seq_rows <= rows_target else rows_target
    grid_size = pl.cdiv(seq_rows, ts_rows)

    itemsize = jnp.dtype(out_dtype).itemsize
    tile_bytes = ts_rows * width * itemsize
    # 2 outputs x 2 pipeline buffers x tile + (tiny, double-buffered) input + slack.
    vmem_limit = int(min(max(4 * tile_bytes + 4 * half * 4 + (1 << 20), 4 << 20),
                         64 << 20))

    out_bytes = 2 * seq_rows * width * itemsize
    cost = pl.CostEstimate(
        flops=3 * seq_len * dim,
        transcendentals=seq_len * dim,
        bytes_accessed=out_bytes + half * 4,
    )

    cos2d, sin2d = pl.pallas_call(
        _rotary_kernel,
        out_shape=(
            jax.ShapeDtypeStruct((seq_rows, width), out_dtype),
            jax.ShapeDtypeStruct((seq_rows, width), out_dtype),
        ),
        grid=(grid_size,),
        in_specs=[pl.BlockSpec((1, half), lambda i: (0, 0))],
        out_specs=(
            pl.BlockSpec((ts_rows, width), lambda i: (i, 0)),
            pl.BlockSpec((ts_rows, width), lambda i: (i, 0)),
        ),
        compiler_params=pltpu.CompilerParams(
            dimension_semantics=_seq_dim_semantics(grid_size),
            vmem_limit_bytes=vmem_limit,
        ),
        cost_estimate=cost,
    )(inv_freq.reshape(1, half).astype(jnp.float32))

    # (seq_rows, group*3*dim) -> (1, seq, 3, 1, dim): pure row-major view.
    cos = cos2d.reshape(1, seq_len, 3, 1, dim)
    sin = sin2d.reshape(1, seq_len, 3, 1, dim)
    return cos, sin


def _reference_cache(seq_len, inv_freq):
    t = jnp.arange(seq_len, dtype=jnp.float32)
    freqs = jnp.einsum("i,j->ij", t, inv_freq)
    emb = jnp.concatenate([freqs, freqs], axis=-1)
    cos_ref = jnp.tile(jnp.cos(emb)[None, :, None, None, :], (1, 1, 3, 1, 1))
    sin_ref = jnp.tile(jnp.sin(emb)[None, :, None, None, :], (1, 1, 3, 1, 1))
    cos_ref = cos_ref.at[:, :, 2, :, :].set(1.0)
    sin_ref = sin_ref.at[:, :, 2, :, :].set(0.0)
    return cos_ref, sin_ref


if __name__ == "__main__":
    # TODO(synk): the nested-tensor (jagged) branch of the PyTorch forward has
    # no clean Pallas equivalent; only the dense-tensor path is implemented.
    key = jax.random.PRNGKey(0)
    batch, seq_len, heads, dim = 2, 8, 4, 32   # seq_dim=1
    x = jax.random.normal(key, (batch, seq_len, heads, dim), dtype=jnp.float32)

    inv_freq = make_inv_freq(dim)
    cos, sin = jax.block_until_ready(rotary_forward(x, inv_freq, seq_dim=1))

    cos_ref, sin_ref = _reference_cache(seq_len, inv_freq)
    assert cos.shape == (1, seq_len, 3, 1, dim) and sin.shape == (1, seq_len, 3, 1, dim)
    assert jnp.allclose(cos, cos_ref, atol=1e-6)
    assert jnp.allclose(sin, sin_ref, atol=1e-6)

    # Tiled + lane-dense grouped path (dim=32 -> width 96 -> G=4 -> 384 lanes),
    # grid > 1 with a partial tail tile.
    long_seq = 1096
    x2 = jnp.zeros((1, long_seq, heads, dim), dtype=jnp.float32)
    cos2, sin2 = jax.block_until_ready(rotary_forward(x2, inv_freq, tile_seq=256))
    cos2_ref, sin2_ref = _reference_cache(long_seq, inv_freq)
    assert cos2.shape == (1, long_seq, 3, 1, dim)
    assert jnp.allclose(cos2, cos2_ref, atol=1e-5)
    assert jnp.allclose(sin2, sin2_ref, atol=1e-5)

    # Already lane-dense head dim (dim=128 -> width 384), tiled slice-store path.
    dim_l = 128
    inv_freq_l = make_inv_freq(dim_l)
    x3 = jnp.zeros((1, 256, 2, dim_l), dtype=jnp.float32)
    cos3, sin3 = jax.block_until_ready(rotary_forward(x3, inv_freq_l, tile_seq=64))
    cos3_ref, sin3_ref = _reference_cache(256, inv_freq_l)
    assert jnp.allclose(cos3, cos3_ref, atol=1e-5)
    assert jnp.allclose(sin3, sin3_ref, atol=1e-5)

    # bf16 output option (f32 math, cast only at the store) -> half HBM bytes.
    cos4, sin4 = jax.block_until_ready(
        rotary_forward(x, inv_freq, out_dtype=jnp.bfloat16))
    assert cos4.dtype == jnp.bfloat16 and sin4.dtype == jnp.bfloat16
    assert jnp.allclose(cos4.astype(jnp.float32), cos_ref, atol=1e-2)
    assert jnp.allclose(sin4.astype(jnp.float32), sin_ref, atol=1e-2)

    print("KERNEL_OK")
</pallas_src>

<mosaic_0001>
module attributes {stable_mosaic.version = 11 : i64} {
  func.func @_rotary_kernel(%arg0: i32, %arg1: memref<1x16xf32, #tpu.memory_space<vmem>>, %arg2: memref<2x384xf32, #tpu.memory_space<vmem>>, %arg3: memref<2x384xf32, #tpu.memory_space<vmem>>) attributes {dimension_semantics = [#tpu.dimension_semantics<parallel>], iteration_bounds = array<i64: 1>, scalar_prefetch = 0 : i64, scratch_operands = 0 : i64, tpu.core_type = #tpu.core_type<tc>, window_params = [{pipeline_mode = #tpu.pipeline_mode<synchronous>, transform_indices = @transform_0, window_bounds = array<i64: 1, 16>}, {transform_indices = @transform_1, window_bounds = array<i64: 2, 384>}, {transform_indices = @transform_2, window_bounds = array<i64: 2, 384>}]} {
    %c2_i32 = arith.constant 2 : i32
    %0 = arith.muli %arg0, %c2_i32 : i32
    %1 = tpu.iota {dimensions = array<i32: 0>} : vector<2x16xi32>
    %2 = vector.broadcast %0 : i32 to vector<2x16xi32>
    %3 = arith.addi %1, %2 : vector<2x16xi32>
    %c0 = arith.constant 0 : index
    %c0_0 = arith.constant 0 : index
    %4 = vector.load %arg1[%c0, %c0_0] : memref<1x16xf32, #tpu.memory_space<vmem>>, vector<1x16xf32>
    %cst = arith.constant 1.000000e+00 : f32
    %5 = vector.broadcast %cst : f32 to vector<2x32xf32>
    %cst_1 = arith.constant 0.000000e+00 : f32
    %6 = vector.broadcast %cst_1 : f32 to vector<2x32xf32>
    %c4_i32 = arith.constant 4 : i32
    %7 = vector.broadcast %c4_i32 : i32 to vector<2x16xi32>
    %8 = arith.muli %3, %7 : vector<2x16xi32>
    %c0_i32 = arith.constant 0 : i32
    %9 = vector.broadcast %c0_i32 : i32 to vector<2x16xi32>
    %10 = arith.addi %8, %9 : vector<2x16xi32>
    %11 = arith.sitofp %10 : vector<2x16xi32> to vector<2x16xf32>
    %12 = vector.broadcast %4 : vector<1x16xf32> to vector<2x16xf32>
    %13 = arith.mulf %11, %12 : vector<2x16xf32>
    %14 = math.cos %13 : vector<2x16xf32>
    %15 = math.sin %13 : vector<2x16xf32>
    %16 = tpu.concatenate %14, %14 in 1 : vector<2x16xf32>, vector<2x16xf32> -> vector<2x32xf32>
    %17 = tpu.concatenate %15, %15 in 1 : vector<2x16xf32>, vector<2x16xf32> -> vector<2x32xf32>
    %c0_2 = arith.constant 0 : index
    %c0_3 = arith.constant 0 : index
    %18 = vector.load %arg2[%c0_2, %c0_3] : memref<2x384xf32, #tpu.memory_space<vmem>>, vector<2x32xf32>
    tpu.vector_store %arg2[%c0_2, %c0_3], %16 {strides = array<i32>} : memref<2x384xf32, #tpu.memory_space<vmem>>, vector<2x32xf32>,
    %c0_4 = arith.constant 0 : index
    %c32 = arith.constant 32 : index
    %19 = vector.load %arg2[%c0_4, %c32] : memref<2x384xf32, #tpu.memory_space<vmem>>, vector<2x32xf32>
    tpu.vector_store %arg2[%c0_4, %c32], %16 {strides = array<i32>} : memref<2x384xf32, #tpu.memory_space<vmem>>, vector<2x32xf32>,
    %c0_5 = arith.constant 0 : index
    %c64 = arith.constant 64 : index
    %20 = vector.load %arg2[%c0_5, %c64] : memref<2x384xf32, #tpu.memory_space<vmem>>, vector<2x32xf32>
    tpu.vector_store %arg2[%c0_5, %c64], %5 {strides = array<i32>} : memref<2x384xf32, #tpu.memory_space<vmem>>, vector<2x32xf32>,
    %c0_6 = arith.constant 0 : index
    %c0_7 = arith.constant 0 : index
    %21 = vector.load %arg3[%c0_6, %c0_7] : memref<2x384xf32, #tpu.memory_space<vmem>>, vector<2x32xf32>
    tpu.vector_store %arg3[%c0_6, %c0_7], %17 {strides = array<i32>} : memref<2x384xf32, #tpu.memory_space<vmem>>, vector<2x32xf32>,
    %c0_8 = arith.constant 0 : index
    %c32_9 = arith.constant 32 : index
    %22 = vector.load %arg3[%c0_8, %c32_9] : memref<2x384xf32, #tpu.memory_space<vmem>>, vector<2x32xf32>
    tpu.vector_store %arg3[%c0_8, %c32_9], %17 {strides = array<i32>} : memref<2x384xf32, #tpu.memory_space<vmem>>, vector<2x32xf32>,
    %c0_10 = arith.constant 0 : index
    %c64_11 = arith.constant 64 : index
    %23 = vector.load %arg3[%c0_10, %c64_11] : memref<2x384xf32, #tpu.memory_space<vmem>>, vector<2x32xf32>
    tpu.vector_store %arg3[%c0_10, %c64_11], %6 {strides = array<i32>} : memref<2x384xf32, #tpu.memory_space<vmem>>, vector<2x32xf32>,
    %c4_i32_12 = arith.constant 4 : i32
    %24 = vector.broadcast %c4_i32_12 : i32 to vector<2x16xi32>
    %25 = arith.muli %3, %24 : vector<2x16xi32>
    %c1_i32 = arith.constant 1 : i32
    %26 = vector.broadcast %c1_i32 : i32 to vector<2x16xi32>
    %27 = arith.addi %25, %26 : vector<2x16xi32>
    %28 = arith.sitofp %27 : vector<2x16xi32> to vector<2x16xf32>
    %29 = vector.broadcast %4 : vector<1x16xf32> to vector<2x16xf32>
    %30 = arith.mulf %28, %29 : vector<2x16xf32>
    %31 = math.cos %30 : vector<2x16xf32>
    %32 = math.sin %30 : vector<2x16xf32>
    %33 = tpu.concatenate %31, %31 in 1 : vector<2x16xf32>, vector<2x16xf32> -> vector<2x32xf32>
    %34 = tpu.concatenate %32, %32 in 1 : vector<2x16xf32>, vector<2x16xf32> -> vector<2x32xf32>
    %c0_13 = arith.constant 0 : index
    %c96 = arith.constant 96 : index
    %35 = vector.load %arg2[%c0_13, %c96] : memref<2x384xf32, #tpu.memory_space<vmem>>, vector<2x32xf32>
    tpu.vector_store %arg2[%c0_13, %c96], %33 {strides = array<i32>} : memref<2x384xf32, #tpu.memory_space<vmem>>, vector<2x32xf32>,
    %c0_14 = arith.constant 0 : index
    %c128 = arith.constant 128 : index
    %36 = vector.load %arg2[%c0_14, %c128] : memref<2x384xf32, #tpu.memory_space<vmem>>, vector<2x32xf32>
    tpu.vector_store %arg2[%c0_14, %c128], %33 {strides = array<i32>} : memref<2x384xf32, #tpu.memory_space<vmem>>, vector<2x32xf32>,
    %c0_15 = arith.constant 0 : index
    %c160 = arith.constant 160 : index
    %37 = vector.load %arg2[%c0_15, %c160] : memref<2x384xf32, #tpu.memory_space<vmem>>, vector<2x32xf32>
    tpu.vector_store %arg2[%c0_15, %c160], %5 {strides = array<i32>} : memref<2x384xf32, #tpu.memory_space<vmem>>, vector<2x32xf32>,
    %c0_16 = arith.constant 0 : index
    %c96_17 = arith.constant 96 : index
    %38 = vector.load %arg3[%c0_16, %c96_17] : memref<2x384xf32, #tpu.memory_space<vmem>>, vector<2x32xf32>
    tpu.vector_store %arg3[%c0_16, %c96_17], %34 {strides = array<i32>} : memref<2x384xf32, #tpu.memory_space<vmem>>, vector<2x32xf32>,
    %c0_18 = arith.constant 0 : index
    %c128_19 = arith.constant 128 : index
    %39 = vector.load %arg3[%c0_18, %c128_19] : memref<2x384xf32, #tpu.memory_space<vmem>>, vector<2x32xf32>
    tpu.vector_store %arg3[%c0_18, %c128_19], %34 {strides = array<i32>} : memref<2x384xf32, #tpu.memory_space<vmem>>, vector<2x32xf32>,
    %c0_20 = arith.constant 0 : index
    %c160_21 = arith.constant 160 : index
    %40 = vector.load %arg3[%c0_20, %c160_21] : memref<2x384xf32, #tpu.memory_space<vmem>>, vector<2x32xf32>
    tpu.vector_store %arg3[%c0_20, %c160_21], %6 {strides = array<i32>} : memref<2x384xf32, #tpu.memory_space<vmem>>, vector<2x32xf32>,
    %c4_i32_22 = arith.constant 4 : i32
    %41 = vector.broadcast %c4_i32_22 : i32 to vector<2x16xi32>
    %42 = arith.muli %3, %41 : vector<2x16xi32>
    %c2_i32_23 = arith.constant 2 : i32
    %43 = vector.broadcast %c2_i32_23 : i32 to vector<2x16xi32>
    %44 = arith.addi %42, %43 : vector<2x16xi32>
    %45 = arith.sitofp %44 : vector<2x16xi32> to vector<2x16xf32>
    %46 = vector.broadcast %4 : vector<1x16xf32> to vector<2x16xf32>
    %47 = arith.mulf %45, %46 : vector<2x16xf32>
    %48 = math.cos %47 : vector<2x16xf32>
    %49 = math.sin %47 : vector<2x16xf32>
    %50 = tpu.concatenate %48, %48 in 1 : vector<2x16xf32>, vector<2x16xf32> -> vector<2x32xf32>
    %51 = tpu.concatenate %49, %49 in 1 : vector<2x16xf32>, vector<2x16xf32> -> vector<2x32xf32>
    %c0_24 = arith.constant 0 : index
    %c192 = arith.constant 192 : index
    %52 = vector.load %arg2[%c0_24, %c192] : memref<2x384xf32, #tpu.memory_space<vmem>>, vector<2x32xf32>
    tpu.vector_store %arg2[%c0_24, %c192], %50 {strides = array<i32>} : memref<2x384xf32, #tpu.memory_space<vmem>>, vector<2x32xf32>,
    %c0_25 = arith.constant 0 : index
    %c224 = arith.constant 224 : index
    %53 = vector.load %arg2[%c0_25, %c224] : memref<2x384xf32, #tpu.memory_space<vmem>>, vector<2x32xf32>
    tpu.vector_store %arg2[%c0_25, %c224], %50 {strides = array<i32>} : memref<2x384xf32, #tpu.memory_space<vmem>>, vector<2x32xf32>,
    %c0_26 = arith.constant 0 : index
    %c256 = arith.constant 256 : index
    %54 = vector.load %arg2[%c0_26, %c256] : memref<2x384xf32, #tpu.memory_space<vmem>>, vector<2x32xf32>
    tpu.vector_store %arg2[%c0_26, %c256], %5 {strides = array<i32>} : memref<2x384xf32, #tpu.memory_space<vmem>>, vector<2x32xf32>,
    %c0_27 = arith.constant 0 : index
    %c192_28 = arith.constant 192 : index
    %55 = vector.load %arg3[%c0_27, %c192_28] : memref<2x384xf32, #tpu.memory_space<vmem>>, vector<2x32xf32>
    tpu.vector_store %arg3[%c0_27, %c192_28], %51 {strides = array<i32>} : memref<2x384xf32, #tpu.memory_space<vmem>>, vector<2x32xf32>,
    %c0_29 = arith.constant 0 : index
    %c224_30 = arith.constant 224 : index
    %56 = vector.load %arg3[%c0_29, %c224_30] : memref<2x384xf32, #tpu.memory_space<vmem>>, vector<2x32xf32>
    tpu.vector_store %arg3[%c0_29, %c224_30], %51 {strides = array<i32>} : memref<2x384xf32, #tpu.memory_space<vmem>>, vector<2x32xf32>,
    %c0_31 = arith.constant 0 : index
    %c256_32 = arith.constant 256 : index
    %57 = vector.load %arg3[%c0_31, %c256_32] : memref<2x384xf32, #tpu.memory_space<vmem>>, vector<2x32xf32>
    tpu.vector_store %arg3[%c0_31, %c256_32], %6 {strides = array<i32>} : memref<2x384xf32, #tpu.memory_space<vmem>>, vector<2x32xf32>,
    %c4_i32_33 = arith.constant 4 : i32
    %58 = vector.broadcast %c4_i32_33 : i32 to vector<2x16xi32>
    %59 = arith.muli %3, %58 : vector<2x16xi32>
    %c3_i32 = arith.constant 3 : i32
    %60 = vector.broadcast %c3_i32 : i32 to vector<2x16xi32>
    %61 = arith.addi %59, %60 : vector<2x16xi32>
    %62 = arith.sitofp %61 : vector<2x16xi32> to vector<2x16xf32>
    %63 = vector.broadcast %4 : vector<1x16xf32> to vector<2x16xf32>
    %64 = arith.mulf %62, %63 : vector<2x16xf32>
    %65 = math.cos %64 : vector<2x16xf32>
    %66 = math.sin %64 : vector<2x16xf32>
    %67 = tpu.concatenate %65, %65 in 1 : vector<2x16xf32>, vector<2x16xf32> -> vector<2x32xf32>
    %68 = tpu.concatenate %66, %66 in 1 : vector<2x16xf32>, vector<2x16xf32> -> vector<2x32xf32>
    %c0_34 = arith.constant 0 : index
    %c288 = arith.constant 288 : index
    %69 = vector.load %arg2[%c0_34, %c288] : memref<2x384xf32, #tpu.memory_space<vmem>>, vector<2x32xf32>
    tpu.vector_store %arg2[%c0_34, %c288], %67 {strides = array<i32>} : memref<2x384xf32, #tpu.memory_space<vmem>>, vector<2x32xf32>,
    %c0_35 = arith.constant 0 : index
    %c320 = arith.constant 320 : index
    %70 = vector.load %arg2[%c0_35, %c320] : memref<2x384xf32, #tpu.memory_space<vmem>>, vector<2x32xf32>
    tpu.vector_store %arg2[%c0_35, %c320], %67 {strides = array<i32>} : memref<2x384xf32, #tpu.memory_space<vmem>>, vector<2x32xf32>,
    %c0_36 = arith.constant 0 : index
    %c352 = arith.constant 352 : index
    %71 = vector.load %arg2[%c0_36, %c352] : memref<2x384xf32, #tpu.memory_space<vmem>>, vector<2x32xf32>
    tpu.vector_store %arg2[%c0_36, %c352], %5 {strides = array<i32>} : memref<2x384xf32, #tpu.memory_space<vmem>>, vector<2x32xf32>,
    %c0_37 = arith.constant 0 : index
    %c288_38 = arith.constant 288 : index
    %72 = vector.load %arg3[%c0_37, %c288_38] : memref<2x384xf32, #tpu.memory_space<vmem>>, vector<2x32xf32>
    tpu.vector_store %arg3[%c0_37, %c288_38], %68 {strides = array<i32>} : memref<2x384xf32, #tpu.memory_space<vmem>>, vector<2x32xf32>,
    %c0_39 = arith.constant 0 : index
    %c320_40 = arith.constant 320 : index
    %73 = vector.load %arg3[%c0_39, %c320_40] : memref<2x384xf32, #tpu.memory_space<vmem>>, vector<2x32xf32>
    tpu.vector_store %arg3[%c0_39, %c320_40], %68 {strides = array<i32>} : memref<2x384xf32, #tpu.memory_space<vmem>>, vector<2x32xf32>,
    %c0_41 = arith.constant 0 : index
    %c352_42 = arith.constant 352 : index
    %74 = vector.load %arg3[%c0_41, %c352_42] : memref<2x384xf32, #tpu.memory_space<vmem>>, vector<2x32xf32>
    tpu.vector_store %arg3[%c0_41, %c352_42], %6 {strides = array<i32>} : memref<2x384xf32, #tpu.memory_space<vmem>>, vector<2x32xf32>,
    return
  }
  func.func @transform_0(%arg0: i32) -> (i32, i32) {
    %c0_i32 = arith.constant 0 : i32
    %c0_i32_0 = arith.constant 0 : i32
    %c0_i32_1 = arith.constant 0 : i32
    return %c0_i32, %c0_i32_0 : i32, i32
  }
  func.func @transform_1(%arg0: i32) -> (i32, i32) {
    %c0_i32 = arith.constant 0 : i32
    %c0_i32_0 = arith.constant 0 : i32
    return %arg0, %c0_i32 : i32, i32
  }
  func.func @transform_2(%arg0: i32) -> (i32, i32) {
    %c0_i32 = arith.constant 0 : i32
    %c0_i32_0 = arith.constant 0 : i32
    return %arg0, %c0_i32 : i32, i32
  }
}

</mosaic_0001>

<llo_original>
// kernel: tpu_custom_call.1
$region0: #{tpu_custom_call.1}
  #allocation0 [shape = 'u32[]', space=smem, size = 0x4, offset = 0x4, fixed_abs, tag = 'smem constant byte address 0x4 - core index']
  #allocation1 [shape = 'u32[72,128]{1,0:T(1,128)}', space=vmem, size = 0x9000, scoped, tag = 'internal scratch']
  %s0 = inlined_call_operand.hbm [shape: f32[1,16], index: 0, kind: input, shape index: {}]
  %s1 = inlined_call_operand.hbm [shape: f32[2,384], index: 1, kind: output, shape index: {0}]
  %s2 = inlined_call_operand.hbm [shape: f32[2,384], index: 2, kind: output, shape index: {1}]
  %3 = xla_tuple %s1, %s2
  %s4 = sld [smem:[#allocation0]]
  $region26: #{tpu_custom_call.1} parent=0
    _
  %s6 = ssub.s32 1, %s4
  %s7 = scalar_select 0, %s6, %s4
  $region1: #{tpu_custom_call.1} parent=0
    #allocation2 [shape = 'u8[512]{0}', space=vmem, size = 0x400, scoped, tag = 'input window, operand 0, single buffered']
    #allocation3 [shape = 's32[1]{0}', space=sflag, size = 0x4, scoped, tag = 'scoped memory for tpu_custom_call.1']
    #allocation4 [shape = 's32[1]{0}', space=sflag, size = 0x4, scoped, tag = 'scoped memory for tpu_custom_call.1']
    #allocation5 [shape = 'u8[3072]{0}', space=vmem, size = 0xc00, scoped, tag = 'output window, operand 0, single buffered']
    #allocation6 [shape = 'u8[3072]{0}', space=vmem, size = 0xc00, scoped, tag = 'output window, operand 1, single buffered']
    #allocation7 [shape = 's32[1]{0}', space=sflag, size = 0x4, scoped, tag = 'scoped memory for tpu_custom_call.1']
    %8 = vsyncpa [#allocation3], 0
    %9 = vsyncpa [#allocation4], 0
    %10 = vsyncpa [#allocation7], 0
    // Predicated region
    $region2: #{tpu_custom_call.1} parent=1 // pred_check
      _
    $region3: #{tpu_custom_call.1} parent=1 // pred_check_branch
      %12 = sbr.rel (0) target = $region5
    $region4: #{tpu_custom_call.1} parent=1 // pred_region
      %14 = vsyncadd [#allocation3], 0
      %s16 = sshll.u32 %s0, 4
      %s17 = int_to_ptr.hbm [resolvable:$true] %s16
      %s18 = sshll.u32 [#allocation2], 4
      %s19 = int_to_ptr.vmem [resolvable:$true] %s18
      %21 = dma.hbm_to_vmem [thread:$0]  %s17, 16, %s19, [#allocation3]
    $region5: #{tpu_custom_call.1} parent=1 // pred_fallthru
      _
    // Predicated region
    $region6: #{tpu_custom_call.1} parent=1 // pred_check
      _
    $region7: #{tpu_custom_call.1} parent=1 // pred_check_branch
      %23 = sbr.rel (0) target = $region9
    $region8: #{tpu_custom_call.1} parent=1 // pred_region
      %25 = dma.done [#allocation3], 16
    $region9: #{tpu_custom_call.1} parent=1 // pred_fallthru
      _
    %s26 = smul.u32 0, 2
    %v27 = vlaneseq
    %v28 = vshrl.u32 %v27, 7
    %v29 = vstv %s26
    %v30 = vadd.s32 %v28, %v29
    %v31 = vld [vmem:[#allocation2] sm:$0x1]
    %v32 = vmul.u32 %v30, 4
    %v33 = vcvt.s32.f32 %v32
    %v35 = vperm.slane %v31, 0
    %v37 = vmul.f32 %v33, %v35
    %v38 = vand.u32 2147483647, %v37
    %vm39 = vcmp.le.f32.partialorder %v38, 0.7853982
    %vm40 = vcmp.lt.s32.totalorder %v37, 0
    %v41 = vand.u32 %v37, 2139095040
    %v42 = vshrl.u32 %v41, 23
    %v43 = vsub.s32 %v42, 127
    %v44 = vand.u32 2147483647, %v37
    %v45 = vand.u32 %v44, 8388607
    %v46 = vor.u32 %v45, 8388608
    %v47 = vsub.s32 0, %v46
    %v48 = vadd.s32 %v43, 1
    %vm49 = vcmp.gt.s32.totalorder %v48, 0
    %v50 = vsel %vm49, %v48, 0
    %v51 = vshrl.u32 %v50, 5
    %v52 = vand.u32 %v50, 31
    %v53 = vsub.s32 32, %v52
    %v54 = vshrl.u32 683565275, %v53
    %v55 = vshll.u32 683565275, %v52
    %v56 = vshrl.u32 2475754826, %v53
    %v57 = vor.u32 %v55, %v56
    %v58 = vshll.u32 2475754826, %v52
    %v59 = vshrl.u32 2131351028, %v53
    %v60 = vor.u32 %v58, %v59
    %v61 = vshll.u32 2131351028, %v52
    %v62 = vshrl.u32 2102212464, %v53
    %v63 = vor.u32 %v61, %v62
    %v64 = vshll.u32 2102212464, %v52
    %v65 = vshrl.u32 920167782, %v53
    %v66 = vor.u32 %v64, %v65
    %v67 = vshll.u32 920167782, %v52
    %v68 = vshrl.u32 1326507024, %v53
    %v69 = vor.u32 %v67, %v68
    %vm70 = vcmp.lt.s32.totalorder %v51, 1
    %vm71 = vcmp.lt.s32.totalorder %v51, 2
    %vm72 = vcmp.lt.s32.totalorder %v51, 3
    %vm73 = vcmp.lt.s32.totalorder %v51, 4
    %v74 = vsel %vm70, %v54, %v57
    %v75 = vsel %vm73, %v63, 2102212464
    %v76 = vsel %vm72, %v60, %v75
    %v77 = vsel %vm71, %v74, %v76
    %v78 = vsel %vm70, %v57, %v60
    %v79 = vsel %vm73, %v66, 920167782
    %v80 = vsel %vm72, %v63, %v79
    %v81 = vsel %vm71, %v78, %v80
    %v82 = vsel %vm70, %v60, %v63
    %v83 = vsel %vm73, %v69, 1326507024
    %v84 = vsel %vm72, %v66, %v83
    %v85 = vsel %vm71, %v82, %v84
    %v86 = vshll.u32 %v46, 8
    %v87 = vand.u32 %v86, 65535
    %v88 = vshrl.u32 %v86, 16
    %v89 = vand.u32 %v85, 65535
    %v90 = vshrl.u32 %v85, 16
    %v91 = vmul.u32 %v87, %v89
    %v92 = vmul.u32 %v87, %v90
    %v93 = vmul.u32 %v88, %v89
    %v94 = vmul.u32 %v88, %v90
    %v95 = vshll.u32 %v92, 16
    %v96 = vshrl.u32 %v92, 16
    %v97 = vshll.u32 %v93, 16
    %v98 = vshrl.u32 %v93, 16
    %vm99 = vc.u32 %v91, %v95
    %v100 = vsel %vm99, 1, 0
    %v101 = vadd.s32 %v91, %v95
    %v102 = vadd.s32 %v94, %v100
    %vm103 = vc.u32 %v101, %v97
    %v104 = vsel %vm103, 1, 0
    %v105 = vadd.s32 %v101, %v97
    %v106 = vadd.s32 %v102, %v104
    %v107 = vadd.s32 %v106, %v96
    %v108 = vadd.s32 %v107, %v98
    %v109 = vand.u32 %v86, 65535
    %v110 = vshrl.u32 %v86, 16
    %v111 = vand.u32 %v81, 65535
    %v112 = vshrl.u32 %v81, 16
    %v113 = vmul.u32 %v109, %v111
    %v114 = vmul.u32 %v109, %v112
    %v115 = vmul.u32 %v110, %v111
    %v116 = vmul.u32 %v110, %v112
    %v117 = vshll.u32 %v114, 16
    %v118 = vshrl.u32 %v114, 16
    %v119 = vshll.u32 %v115, 16
    %v120 = vshrl.u32 %v115, 16
    %vm121 = vc.u32 %v113, %v117
    %v122 = vsel %vm121, 1, 0
    %v123 = vadd.s32 %v113, %v117
    %v124 = vadd.s32 %v116, %v122
    %vm125 = vc.u32 %v123, %v119
    %v126 = vsel %vm125, 1, 0
    %v127 = vadd.s32 %v123, %v119
    %v128 = vadd.s32 %v124, %v126
    %v129 = vadd.s32 %v128, %v118
    %v130 = vadd.s32 %v129, %v120
    %v131 = vmul.u32 %v86, %v77
    %v132 = vadd.s32 %v108, %v127
    %vm133 = vc.u32 %v108, %v127
    %v134 = vadd.s32 %v130, 1
    %v135 = vsel %vm133, %v134, %v130
    %v136 = vadd.s32 %v131, %v135
    %v137 = vadd.s32 %v136, 536870912
    %v138 = vshrl.u32 %v137, 30
    %v139 = vshll.u32 %v138, 30
    %v140 = vsub.s32 %v136, %v139
    %vm141 = vcmp.lt.s32.totalorder %v140, 0
    %v142 = vsub.s32 0, %v140
    %v143 = vsel %vm141, %v142, %v140
    %v144 = vclz %v143
    %v145 = vsub.s32 %v144, 2
    %vm146 = vcmp.gt.s32.totalorder 0, %v145
    %v147 = vsel %vm146, 0, %v145
    %v148 = vsub.s32 32, %v147
    %v149 = vshll.u32 %v140, %v147
    %v150 = vshrl.u32 %v132, %v148
    %v151 = vor.u32 %v149, %v150
    %v152 = vsub.s32 4294967266, %v147
    %v153 = vadd.s32 %v152, 127
    %v154 = vshll.u32 %v153, 23
    %v155 = vor.u32 4788187, %v154
    %v156 = vand.u32 2147483647, %v155
    %v158 = vcvt.s32.f32 %v151
    %v159 = vmul.f32 %v158, %v156
    %v160 = vxor.u32 %v159, 2147483648
    %v161 = vsel %vm40, %v160, %v159
    %v162 = vsub.s32 4, %v138
    %v163 = vsel %vm40, %v162, %v138
    %v164 = vsel %vm39, %v37, %v161
    %v165 = vsel %vm39, 0, %v163
    %v166 = vmul.f32 %v164, %v164
    %v167 = vmul.f32 %v166, -0.001358992
    %v168 = vadd.f32 %v167, 0.041655596
    %v169 = vmul.f32 %v166, %v168
    %v170 = vadd.f32 %v169, -0.4999988
    %v171 = vmul.f32 %v166, %v170
    %v172 = vadd.f32 1.0, %v171
    %v173 = vmul.f32 %v164, %v164
    %v174 = vmul.f32 %v173, -0.00019511016
    %v175 = vadd.f32 %v174, 0.008332121
    %v176 = vmul.f32 %v173, %v175
    %v177 = vadd.f32 %v176, -0.16666654
    %v178 = vmul.f32 %v173, %v177
    %v179 = vadd.f32 %v178, 1.0
    %v180 = vmul.f32 %v179, %v164
    %vm181 = vweird.f32 %v37
    %v182 = vand.u32 %v165, 3
    %vm183 = vcmp.lt.s32.totalorder %v182, 2
    %vm184 = vcmp.eq.s32.totalorder %v182, 0
    %v185 = vxor.u32 %v180, 2147483648
    %v186 = vsel %vm184, %v172, %v185
    %vm187 = vcmp.eq.s32.totalorder %v182, 2
    %v188 = vxor.u32 %v172, 2147483648
    %v189 = vsel %vm187, %v188, %v180
    %v190 = vsel %vm183, %v186, %v189
    %v191 = vsel %vm181, nan, %v190
    %v192 = vand.u32 2147483647, %v37
    %vm193 = vcmp.le.f32.partialorder %v192, 0.7853982
    %vm194 = vcmp.lt.s32.totalorder %v37, 0
    %v195 = vand.u32 %v37, 2139095040
    %v196 = vshrl.u32 %v195, 23
    %v197 = vsub.s32 %v196, 127
    %v198 = vand.u32 2147483647, %v37
    %v199 = vand.u32 %v198, 8388607
    %v200 = vor.u32 %v199, 8388608
    %v201 = vsub.s32 0, %v200
    %v202 = vadd.s32 %v197, 1
    %vm203 = vcmp.gt.s32.totalorder %v202, 0
    %v204 = vsel %vm203, %v202, 0
    %v205 = vshrl.u32 %v204, 5
    %v206 = vand.u32 %v204, 31
    %v207 = vsub.s32 32, %v206
    %v208 = vshrl.u32 683565275, %v207
    %v209 = vshll.u32 683565275, %v206
    %v210 = vshrl.u32 2475754826, %v207
    %v211 = vor.u32 %v209, %v210
    %v212 = vshll.u32 2475754826, %v206
    %v213 = vshrl.u32 2131351028, %v207
    %v214 = vor.u32 %v212, %v213
    %v215 = vshll.u32 2131351028, %v206
    %v216 = vshrl.u32 2102212464, %v207
    %v217 = vor.u32 %v215, %v216
    %v218 = vshll.u32 2102212464, %v206
    %v219 = vshrl.u32 920167782, %v207
    %v220 = vor.u32 %v218, %v219
    %v221 = vshll.u32 920167782, %v206
    %v222 = vshrl.u32 1326507024, %v207
    %v223 = vor.u32 %v221, %v222
    %vm224 = vcmp.lt.s32.totalorder %v205, 1
    %vm225 = vcmp.lt.s32.totalorder %v205, 2
    %vm226 = vcmp.lt.s32.totalorder %v205, 3
    %vm227 = vcmp.lt.s32.totalorder %v205, 4
    %v228 = vsel %vm224, %v208, %v211
    %v229 = vsel %vm227, %v217, 2102212464
    %v230 = vsel %vm226, %v214, %v229
    %v231 = vsel %vm225, %v228, %v230
    %v232 = vsel %vm224, %v211, %v214
    %v233 = vsel %vm227, %v220, 920167782
    %v234 = vsel %vm226, %v217, %v233
    %v235 = vsel %vm225, %v232, %v234
    %v236 = vsel %vm224, %v214, %v217
    %v237 = vsel %vm227, %v223, 1326507024
    %v238 = vsel %vm226, %v220, %v237
    %v239 = vsel %vm225, %v236, %v238
    %v240 = vshll.u32 %v200, 8
    %v241 = vand.u32 %v240, 65535
    %v242 = vshrl.u32 %v240, 16
    %v243 = vand.u32 %v239, 65535
    %v244 = vshrl.u32 %v239, 16
    %v245 = vmul.u32 %v241, %v243
    %v246 = vmul.u32 %v241, %v244
    %v247 = vmul.u32 %v242, %v243
    %v248 = vmul.u32 %v242, %v244
    %v249 = vshll.u32 %v246, 16
    %v250 = vshrl.u32 %v246, 16
    %v251 = vshll.u32 %v247, 16
    %v252 = vshrl.u32 %v247, 16
    %vm253 = vc.u32 %v245, %v249
    %v254 = vsel %vm253, 1, 0
    %v255 = vadd.s32 %v245, %v249
    %v256 = vadd.s32 %v248, %v254
    %vm257 = vc.u32 %v255, %v251
    %v258 = vsel %vm257, 1, 0
    %v259 = vadd.s32 %v255, %v251
    %v260 = vadd.s32 %v256, %v258
    %v261 = vadd.s32 %v260, %v250
    %v262 = vadd.s32 %v261, %v252
    %v263 = vand.u32 %v240, 65535
    %v264 = vshrl.u32 %v240, 16
    %v265 = vand.u32 %v235, 65535
    %v266 = vshrl.u32 %v235, 16
    %v267 = vmul.u32 %v263, %v265
    %v268 = vmul.u32 %v263, %v266
    %v269 = vmul.u32 %v264, %v265
    %v270 = vmul.u32 %v264, %v266
    %v271 = vshll.u32 %v268, 16
    %v272 = vshrl.u32 %v268, 16
    %v273 = vshll.u32 %v269, 16
    %v274 = vshrl.u32 %v269, 16
    %vm275 = vc.u32 %v267, %v271
    %v276 = vsel %vm275, 1, 0
    %v277 = vadd.s32 %v267, %v271
    %v278 = vadd.s32 %v270, %v276
    %vm279 = vc.u32 %v277, %v273
    %v280 = vsel %vm279, 1, 0
    %v281 = vadd.s32 %v277, %v273
    %v282 = vadd.s32 %v278, %v280
    %v283 = vadd.s32 %v282, %v272
    %v284 = vadd.s32 %v283, %v274
    %v285 = vmul.u32 %v240, %v231
    %v286 = vadd.s32 %v262, %v281
    %vm287 = vc.u32 %v262, %v281
    %v288 = vadd.s32 %v284, 1
    %v289 = vsel %vm287, %v288, %v284
    %v290 = vadd.s32 %v285, %v289
    %v291 = vadd.s32 %v290, 536870912
    %v292 = vshrl.u32 %v291, 30
    %v293 = vshll.u32 %v292, 30
    %v294 = vsub.s32 %v290, %v293
    %vm295 = vcmp.lt.s32.totalorder %v294, 0
    %v296 = vsub.s32 0, %v294
    %v297 = vsel %vm295, %v296, %v294
    %v298 = vclz %v297
    %v299 = vsub.s32 %v298, 2
    %vm300 = vcmp.gt.s32.totalorder 0, %v299
    %v301 = vsel %vm300, 0, %v299
    %v302 = vsub.s32 32, %v301
    %v303 = vshll.u32 %v294, %v301
    %v304 = vshrl.u32 %v286, %v302
    %v305 = vor.u32 %v303, %v304
    %v306 = vsub.s32 4294967266, %v301
    %v307 = vadd.s32 %v306, 127
    %v308 = vshll.u32 %v307, 23
    %v309 = vor.u32 4788187, %v308
    %v310 = vand.u32 2147483647, %v309
    %v312 = vcvt.s32.f32 %v305
    %v313 = vmul.f32 %v312, %v310
    %v314 = vxor.u32 %v313, 2147483648
    %v315 = vsel %vm194, %v314, %v313
    %v316 = vsub.s32 4, %v292
    %v317 = vsel %vm194, %v316, %v292
    %v318 = vsel %vm193, %v37, %v315
    %v319 = vsel %vm193, 0, %v317
    %v320 = vmul.f32 %v318, %v318
    %v321 = vmul.f32 %v320, -0.001358992
    %v322 = vadd.f32 %v321, 0.041655596
    %v323 = vmul.f32 %v320, %v322
    %v324 = vadd.f32 %v323, -0.4999988
    %v325 = vmul.f32 %v320, %v324
    %v326 = vadd.f32 1.0, %v325
    %v327 = vmul.f32 %v318, %v318
    %v328 = vmul.f32 %v327, -0.00019511016
    %v329 = vadd.f32 %v328, 0.008332121
    %v330 = vmul.f32 %v327, %v329
    %v331 = vadd.f32 %v330, -0.16666654
    %v332 = vmul.f32 %v327, %v331
    %v333 = vadd.f32 %v332, 1.0
    %v334 = vmul.f32 %v333, %v318
    %vm335 = vweird.f32 %v37
    %v336 = vadd.s32 %v319, 3
    %v337 = vand.u32 %v336, 3
    %vm338 = vcmp.lt.s32.totalorder %v337, 2
    %vm339 = vcmp.eq.s32.totalorder %v337, 0
    %v340 = vxor.u32 %v334, 2147483648
    %v341 = vsel %vm339, %v326, %v340
    %vm342 = vcmp.eq.s32.totalorder %v337, 2
    %v343 = vxor.u32 %v326, 2147483648
    %v344 = vsel %vm342, %v343, %v334
    %v345 = vsel %vm338, %v341, %v344
    %v346 = vsel %vm335, nan, %v345
    %348 = vrot.lane.b32.xlu0 %v191, 16
    %v349 = vpop.permute.xlu0 %348
    %vm351 = vcmask 130048
    %v352 = vsel %vm351, %v191, %v349
    %354 = vrot.lane.b32.xlu0 %v346, 16
    %v355 = vpop.permute.xlu0 %354
    %v357 = vsel %vm351, %v346, %v355
    %vm358 = vcmask 254976
    %359 = vst.msk [vmem:[#allocation5] sm:$0x3] %vm358, %v352
    %361 = vrot.lane.b32.xlu0 %v352, 32
    %v362 = vpop.permute.xlu0 %361
    %vm364 = vcmask 517376
    %365 = vst.msk [vmem:[#allocation5] sm:$0x3] %vm364, %v362
    %vm366 = vcmask 779776
    %367 = vst.msk [vmem:[#allocation5] sm:$0x3] %vm366, 1.0
    %368 = vst.msk [vmem:[#allocation6] sm:$0x3] %vm358, %v357
    %370 = vrot.lane.b32.xlu0 %v357, 32
    %v371 = vpop.permute.xlu0 %370
    %373 = vst.msk [vmem:[#allocation6] sm:$0x3] %vm364, %v371
    %374 = vst.msk [vmem:[#allocation6] sm:$0x3] %vm366, 0.0
    %v375 = vadd.s32 %v32, 1
    %v376 = vcvt.s32.f32 %v375
    %v377 = vmul.f32 %v376, %v35
    %v378 = vand.u32 2147483647, %v377
    %vm379 = vcmp.le.f32.partialorder %v378, 0.7853982
    %vm380 = vcmp.lt.s32.totalorder %v377, 0
    %v381 = vand.u32 %v377, 2139095040
    %v382 = vshrl.u32 %v381, 23
    %v383 = vsub.s32 %v382, 127
    %v384 = vand.u32 2147483647, %v377
    %v385 = vand.u32 %v384, 8388607
    %v386 = vor.u32 %v385, 8388608
    %v387 = vsub.s32 0, %v386
    %v388 = vadd.s32 %v383, 1
    %vm389 = vcmp.gt.s32.totalorder %v388, 0
    %v390 = vsel %vm389, %v388, 0
    %v391 = vshrl.u32 %v390, 5
    %v392 = vand.u32 %v390, 31
    %v393 = vsub.s32 32, %v392
    %v394 = vshrl.u32 683565275, %v393
    %v395 = vshll.u32 683565275, %v392
    %v396 = vshrl.u32 2475754826, %v393
    %v397 = vor.u32 %v395, %v396
    %v398 = vshll.u32 2475754826, %v392
    %v399 = vshrl.u32 2131351028, %v393
    %v400 = vor.u32 %v398, %v399
    %v401 = vshll.u32 2131351028, %v392
    %v402 = vshrl.u32 2102212464, %v393
    %v403 = vor.u32 %v401, %v402
    %v404 = vshll.u32 2102212464, %v392
    %v405 = vshrl.u32 920167782, %v393
    %v406 = vor.u32 %v404, %v405
    %v407 = vshll.u32 920167782, %v392
    %v408 = vshrl.u32 1326507024, %v393
    %v409 = vor.u32 %v407, %v408
    %vm410 = vcmp.lt.s32.totalorder %v391, 1
    %vm411 = vcmp.lt.s32.totalorder %v391, 2
    %vm412 = vcmp.lt.s32.totalorder %v391, 3
    %vm413 = vcmp.lt.s32.totalorder %v391, 4
    %v414 = vsel %vm410, %v394, %v397
    %v415 = vsel %vm413, %v403, 2102212464
    %v416 = vsel %vm412, %v400, %v415
    %v417 = vsel %vm411, %v414, %v416
    %v418 = vsel %vm410, %v397, %v400
    %v419 = vsel %vm413, %v406, 920167782
    %v420 = vsel %vm412, %v403, %v419
    %v421 = vsel %vm411, %v418, %v420
    %v422 = vsel %vm410, %v400, %v403
    %v423 = vsel %vm413, %v409, 1326507024
    %v424 = vsel %vm412, %v406, %v423
    %v425 = vsel %vm411, %v422, %v424
    %v426 = vshll.u32 %v386, 8
    %v427 = vand.u32 %v426, 65535
    %v428 = vshrl.u32 %v426, 16
    %v429 = vand.u32 %v425, 65535
    %v430 = vshrl.u32 %v425, 16
    %v431 = vmul.u32 %v427, %v429
    %v432 = vmul.u32 %v427, %v430
    %v433 = vmul.u32 %v428, %v429
    %v434 = vmul.u32 %v428, %v430
    %v435 = vshll.u32 %v432, 16
    %v436 = vshrl.u32 %v432, 16
    %v437 = vshll.u32 %v433, 16
    %v438 = vshrl.u32 %v433, 16
    %vm439 = vc.u32 %v431, %v435
    %v440 = vsel %vm439, 1, 0
    %v441 = vadd.s32 %v431, %v435
    %v442 = vadd.s32 %v434, %v440
    %vm443 = vc.u32 %v441, %v437
    %v444 = vsel %vm443, 1, 0
    %v445 = vadd.s32 %v441, %v437
    %v446 = vadd.s32 %v442, %v444
    %v447 = vadd.s32 %v446, %v436
    %v448 = vadd.s32 %v447, %v438
    %v449 = vand.u32 %v426, 65535
    %v450 = vshrl.u32 %v426, 16
    %v451 = vand.u32 %v421, 65535
    %v452 = vshrl.u32 %v421, 16
    %v453 = vmul.u32 %v449, %v451
    %v454 = vmul.u32 %v449, %v452
    %v455 = vmul.u32 %v450, %v451
    %v456 = vmul.u32 %v450, %v452
    %v457 = vshll.u32 %v454, 16
    %v458 = vshrl.u32 %v454, 16
    %v459 = vshll.u32 %v455, 16
    %v460 = vshrl.u32 %v455, 16
    %vm461 = vc.u32 %v453, %v457
    %v462 = vsel %vm461, 1, 0
    %v463 = vadd.s32 %v453, %v457
    %v464 = vadd.s32 %v456, %v462
    %vm465 = vc.u32 %v463, %v459
    %v466 = vsel %vm465, 1, 0
    %v467 = vadd.s32 %v463, %v459
    %v468 = vadd.s32 %v464, %v466
    %v469 = vadd.s32 %v468, %v458
    %v470 = vadd.s32 %v469, %v460
    %v471 = vmul.u32 %v426, %v417
    %v472 = vadd.s32 %v448, %v467
    %vm473 = vc.u32 %v448, %v467
    %v474 = vadd.s32 %v470, 1
    %v475 = vsel %vm473, %v474, %v470
    %v476 = vadd.s32 %v471, %v475
    %v477 = vadd.s32 %v476, 536870912
    %v478 = vshrl.u32 %v477, 30
    %v479 = vshll.u32 %v478, 30
    %v480 = vsub.s32 %v476, %v479
    %vm481 = vcmp.lt.s32.totalorder %v480, 0
    %v482 = vsub.s32 0, %v480
    %v483 = vsel %vm481, %v482, %v480
    %v484 = vclz %v483
    %v485 = vsub.s32 %v484, 2
    %vm486 = vcmp.gt.s32.totalorder 0, %v485
    %v487 = vsel %vm486, 0, %v485
    %v488 = vsub.s32 32, %v487
    %v489 = vshll.u32 %v480, %v487
    %v490 = vshrl.u32 %v472, %v488
    %v491 = vor.u32 %v489, %v490
    %v492 = vsub.s32 4294967266, %v487
    %v493 = vadd.s32 %v492, 127
    %v494 = vshll.u32 %v493, 23
    %v495 = vor.u32 4788187, %v494
    %v496 = vand.u32 2147483647, %v495
    %v498 = vcvt.s32.f32 %v491
    %v499 = vmul.f32 %v498, %v496
    %v500 = vxor.u32 %v499, 2147483648
    %v501 = vsel %vm380, %v500, %v499
    %v502 = vsub.s32 4, %v478
    %v503 = vsel %vm380, %v502, %v478
    %v504 = vsel %vm379, %v377, %v501
    %v505 = vsel %vm379, 0, %v503
    %v506 = vmul.f32 %v504, %v504
    %v507 = vmul.f32 %v506, -0.001358992
    %v508 = vadd.f32 %v507, 0.041655596
    %v509 = vmul.f32 %v506, %v508
    %v510 = vadd.f32 %v509, -0.4999988
    %v511 = vmul.f32 %v506, %v510
    %v512 = vadd.f32 1.0, %v511
    %v513 = vmul.f32 %v504, %v504
    %v514 = vmul.f32 %v513, -0.00019511016
    %v515 = vadd.f32 %v514, 0.008332121
    %v516 = vmul.f32 %v513, %v515
    %v517 = vadd.f32 %v516, -0.16666654
    %v518 = vmul.f32 %v513, %v517
    %v519 = vadd.f32 %v518, 1.0
    %v520 = vmul.f32 %v519, %v504
    %vm521 = vweird.f32 %v377
    %v522 = vand.u32 %v505, 3
    %vm523 = vcmp.lt.s32.totalorder %v522, 2
    %vm524 = vcmp.eq.s32.totalorder %v522, 0
    %v525 = vxor.u32 %v520, 2147483648
    %v526 = vsel %vm524, %v512, %v525
    %vm527 = vcmp.eq.s32.totalorder %v522, 2
    %v528 = vxor.u32 %v512, 2147483648
    %v529 = vsel %vm527, %v528, %v520
    %v530 = vsel %vm523, %v526, %v529
    %v531 = vsel %vm521, nan, %v530
    %v532 = vand.u32 2147483647, %v377
    %vm533 = vcmp.le.f32.partialorder %v532, 0.7853982
    %vm534 = vcmp.lt.s32.totalorder %v377, 0
    %v535 = vand.u32 %v377, 2139095040
    %v536 = vshrl.u32 %v535, 23
    %v537 = vsub.s32 %v536, 127
    %v538 = vand.u32 2147483647, %v377
    %v539 = vand.u32 %v538, 8388607
    %v540 = vor.u32 %v539, 8388608
    %v541 = vsub.s32 0, %v540
    %v542 = vadd.s32 %v537, 1
    %vm543 = vcmp.gt.s32.totalorder %v542, 0
    %v544 = vsel %vm543, %v542, 0
    %v545 = vshrl.u32 %v544, 5
    %v546 = vand.u32 %v544, 31
    %v547 = vsub.s32 32, %v546
    %v548 = vshrl.u32 683565275, %v547
    %v549 = vshll.u32 683565275, %v546
    %v550 = vshrl.u32 2475754826, %v547
    %v551 = vor.u32 %v549, %v550
    %v552 = vshll.u32 2475754826, %v546
    %v553 = vshrl.u32 2131351028, %v547
    %v554 = vor.u32 %v552, %v553
    %v555 = vshll.u32 2131351028, %v546
    %v556 = vshrl.u32 2102212464, %v547
    %v557 = vor.u32 %v555, %v556
    %v558 = vshll.u32 2102212464, %v546
    %v559 = vshrl.u32 920167782, %v547
    %v560 = vor.u32 %v558, %v559
    %v561 = vshll.u32 920167782, %v546
    %v562 = vshrl.u32 1326507024, %v547
    %v563 = vor.u32 %v561, %v562
    %vm564 = vcmp.lt.s32.totalorder %v545, 1
    %vm565 = vcmp.lt.s32.totalorder %v545, 2
    %vm566 = vcmp.lt.s32.totalorder %v545, 3
    %vm567 = vcmp.lt.s32.totalorder %v545, 4
    %v568 = vsel %vm564, %v548, %v551
    %v569 = vsel %vm567, %v557, 2102212464
    %v570 = vsel %vm566, %v554, %v569
    %v571 = vsel %vm565, %v568, %v570
    %v572 = vsel %vm564, %v551, %v554
    %v573 = vsel %vm567, %v560, 920167782
    %v574 = vsel %vm566, %v557, %v573
    %v575 = vsel %vm565, %v572, %v574
    %v576 = vsel %vm564, %v554, %v557
    %v577 = vsel %vm567, %v563, 1326507024
    %v578 = vsel %vm566, %v560, %v577
    %v579 = vsel %vm565, %v576, %v578
    %v580 = vshll.u32 %v540, 8
    %v581 = vand.u32 %v580, 65535
    %v582 = vshrl.u32 %v580, 16
    %v583 = vand.u32 %v579, 65535
    %v584 = vshrl.u32 %v579, 16
    %v585 = vmul.u32 %v581, %v583
    %v586 = vmul.u32 %v581, %v584
    %v587 = vmul.u32 %v582, %v583
    %v588 = vmul.u32 %v582, %v584
    %v589 = vshll.u32 %v586, 16
    %v590 = vshrl.u32 %v586, 16
    %v591 = vshll.u32 %v587, 16
    %v592 = vshrl.u32 %v587, 16
    %vm593 = vc.u32 %v585, %v589
    %v594 = vsel %vm593, 1, 0
    %v595 = vadd.s32 %v585, %v589
    %v596 = vadd.s32 %v588, %v594
    %vm597 = vc.u32 %v595, %v591
    %v598 = vsel %vm597, 1, 0
    %v599 = vadd.s32 %v595, %v591
    %v600 = vadd.s32 %v596, %v598
    %v601 = vadd.s32 %v600, %v590
    %v602 = vadd.s32 %v601, %v592
    %v603 = vand.u32 %v580, 65535
    %v604 = vshrl.u32 %v580, 16
    %v605 = vand.u32 %v575, 65535
    %v606 = vshrl.u32 %v575, 16
    %v607 = vmul.u32 %v603, %v605
    %v608 = vmul.u32 %v603, %v606
    %v609 = vmul.u32 %v604, %v605
    %v610 = vmul.u32 %v604, %v606
    %v611 = vshll.u32 %v608, 16
    %v612 = vshrl.u32 %v608, 16
    %v613 = vshll.u32 %v609, 16
    %v614 = vshrl.u32 %v609, 16
    %vm615 = vc.u32 %v607, %v611
    %v616 = vsel %vm615, 1, 0
    %v617 = vadd.s32 %v607, %v611
    %v618 = vadd.s32 %v610, %v616
    %vm619 = vc.u32 %v617, %v613
    %v620 = vsel %vm619, 1, 0
    %v621 = vadd.s32 %v617, %v613
    %v622 = vadd.s32 %v618, %v620
    %v623 = vadd.s32 %v622, %v612
    %v624 = vadd.s32 %v623, %v614
    %v625 = vmul.u32 %v580, %v571
    %v626 = vadd.s32 %v602, %v621
    %vm627 = vc.u32 %v602, %v621
    %v628 = vadd.s32 %v624, 1
    %v629 = vsel %vm627, %v628, %v624
    %v630 = vadd.s32 %v625, %v629
    %v631 = vadd.s32 %v630, 536870912
    %v632 = vshrl.u32 %v631, 30
    %v633 = vshll.u32 %v632, 30
    %v634 = vsub.s32 %v630, %v633
    %vm635 = vcmp.lt.s32.totalorder %v634, 0
    %v636 = vsub.s32 0, %v634
    %v637 = vsel %vm635, %v636, %v634
    %v638 = vclz %v637
    %v639 = vsub.s32 %v638, 2
    %vm640 = vcmp.gt.s32.totalorder 0, %v639
    %v641 = vsel %vm640, 0, %v639
    %v642 = vsub.s32 32, %v641
    %v643 = vshll.u32 %v634, %v641
    %v644 = vshrl.u32 %v626, %v642
    %v645 = vor.u32 %v643, %v644
    %v646 = vsub.s32 4294967266, %v641
    %v647 = vadd.s32 %v646, 127
    %v648 = vshll.u32 %v647, 23
    %v649 = vor.u32 4788187, %v648
    %v650 = vand.u32 2147483647, %v649
    %v652 = vcvt.s32.f32 %v645
    %v653 = vmul.f32 %v652, %v650
    %v654 = vxor.u32 %v653, 2147483648
    %v655 = vsel %vm534, %v654, %v653
    %v656 = vsub.s32 4, %v632
    %v657 = vsel %vm534, %v656, %v632
    %v658 = vsel %vm533, %v377, %v655
    %v659 = vsel %vm533, 0, %v657
    %v660 = vmul.f32 %v658, %v658
    %v661 = vmul.f32 %v660, -0.001358992
    %v662 = vadd.f32 %v661, 0.041655596
    %v663 = vmul.f32 %v660, %v662
    %v664 = vadd.f32 %v663, -0.4999988
    %v665 = vmul.f32 %v660, %v664
    %v666 = vadd.f32 1.0, %v665
    %v667 = vmul.f32 %v658, %v658
    %v668 = vmul.f32 %v667, -0.00019511016
    %v669 = vadd.f32 %v668, 0.008332121
    %v670 = vmul.f32 %v667, %v669
    %v671 = vadd.f32 %v670, -0.16666654
    %v672 = vmul.f32 %v667, %v671
    %v673 = vadd.f32 %v672, 1.0
    %v674 = vmul.f32 %v673, %v658
    %vm675 = vweird.f32 %v377
    %v676 = vadd.s32 %v659, 3
    %v677 = vand.u32 %v676, 3
    %vm678 = vcmp.lt.s32.totalorder %v677, 2
    %vm679 = vcmp.eq.s32.totalorder %v677, 0
    %v680 = vxor.u32 %v674, 2147483648
    %v681 = vsel %vm679, %v666, %v680
    %vm682 = vcmp.eq.s32.totalorder %v677, 2
    %v683 = vxor.u32 %v666, 2147483648
    %v684 = vsel %vm682, %v683, %v674
    %v685 = vsel %vm678, %v681, %v684
    %v686 = vsel %vm675, nan, %v685
    %688 = vrot.lane.b32.xlu0 %v531, 16
    %v689 = vpop.permute.xlu0 %688
    %v691 = vsel %vm351, %v531, %v689
    %693 = vrot.lane.b32.xlu0 %v686, 16
    %v694 = vpop.permute.xlu0 %693
    %v696 = vsel %vm351, %v686, %v694
    %698 = vrot.lane.b32.xlu0 %v691, 96
    %v699 = vpop.permute.xlu0 %698
    %vm701 = vcmask 1042176
    %702 = vst.msk [vmem:[#allocation5] sm:$0x3] %vm701, %v699
    %703 = vst.msk [vmem:[#allocation5 + $0x2] sm:$0x3] %vm358, %v691
    %704 = vst.msk [vmem:[#allocation5 + $0x2] sm:$0x3] %vm364, 1.0
    %706 = vrot.lane.b32.xlu0 %v696, 96
    %v707 = vpop.permute.xlu0 %706
    %709 = vst.msk [vmem:[#allocation6] sm:$0x3] %vm701, %v707
    %710 = vst.msk [vmem:[#allocation6 + $0x2] sm:$0x3] %vm358, %v696
    %711 = vst.msk [vmem:[#allocation6 + $0x2] sm:$0x3] %vm364, 0.0
    %v712 = vadd.s32 %v32, 2
    %v713 = vcvt.s32.f32 %v712
    %v714 = vmul.f32 %v713, %v35
    %v715 = vand.u32 2147483647, %v714
    %vm716 = vcmp.le.f32.partialorder %v715, 0.7853982
    %vm717 = vcmp.lt.s32.totalorder %v714, 0
    %v718 = vand.u32 %v714, 2139095040
    %v719 = vshrl.u32 %v718, 23
    %v720 = vsub.s32 %v719, 127
    %v721 = vand.u32 2147483647, %v714
    %v722 = vand.u32 %v721, 8388607
    %v723 = vor.u32 %v722, 8388608
    %v724 = vsub.s32 0, %v723
    %v725 = vadd.s32 %v720, 1
    %vm726 = vcmp.gt.s32.totalorder %v725, 0
    %v727 = vsel %vm726, %v725, 0
    %v728 = vshrl.u32 %v727, 5
    %v729 = vand.u32 %v727, 31
    %v730 = vsub.s32 32, %v729
    %v731 = vshrl.u32 683565275, %v730
    %v732 = vshll.u32 683565275, %v729
    %v733 = vshrl.u32 2475754826, %v730
    %v734 = vor.u32 %v732, %v733
    %v735 = vshll.u32 2475754826, %v729
    %v736 = vshrl.u32 2131351028, %v730
    %v737 = vor.u32 %v735, %v736
    %v738 = vshll.u32 2131351028, %v729
    %v739 = vshrl.u32 2102212464, %v730
    %v740 = vor.u32 %v738, %v739
    %v741 = vshll.u32 2102212464, %v729
    %v742 = vshrl.u32 920167782, %v730
    %v743 = vor.u32 %v741, %v742
    %v744 = vshll.u32 920167782, %v729
    %v745 = vshrl.u32 1326507024, %v730
    %v746 = vor.u32 %v744, %v745
    %vm747 = vcmp.lt.s32.totalorder %v728, 1
    %vm748 = vcmp.lt.s32.totalorder %v728, 2
    %vm749 = vcmp.lt.s32.totalorder %v728, 3
    %vm750 = vcmp.lt.s32.totalorder %v728, 4
    %v751 = vsel %vm747, %v731, %v734
    %v752 = vsel %vm750, %v740, 2102212464
    %v753 = vsel %vm749, %v737, %v752
    %v754 = vsel %vm748, %v751, %v753
    %v755 = vsel %vm747, %v734, %v737
    %v756 = vsel %vm750, %v743, 920167782
    %v757 = vsel %vm749, %v740, %v756
    %v758 = vsel %vm748, %v755, %v757
    %v759 = vsel %vm747, %v737, %v740
    %v760 = vsel %vm750, %v746, 1326507024
    %v761 = vsel %vm749, %v743, %v760
    %v762 = vsel %vm748, %v759, %v761
    %v763 = vshll.u32 %v723, 8
    %v764 = vand.u32 %v763, 65535
    %v765 = vshrl.u32 %v763, 16
    %v766 = vand.u32 %v762, 65535
    %v767 = vshrl.u32 %v762, 16
    %v768 = vmul.u32 %v764, %v766
    %v769 = vmul.u32 %v764, %v767
    %v770 = vmul.u32 %v765, %v766
    %v771 = vmul.u32 %v765, %v767
    %v772 = vshll.u32 %v769, 16
    %v773 = vshrl.u32 %v769, 16
    %v774 = vshll.u32 %v770, 16
    %v775 = vshrl.u32 %v770, 16
    %vm776 = vc.u32 %v768, %v772
    %v777 = vsel %vm776, 1, 0
    %v778 = vadd.s32 %v768, %v772
    %v779 = vadd.s32 %v771, %v777
    %vm780 = vc.u32 %v778, %v774
    %v781 = vsel %vm780, 1, 0
    %v782 = vadd.s32 %v778, %v774
    %v783 = vadd.s32 %v779, %v781
    %v784 = vadd.s32 %v783, %v773
    %v785 = vadd.s32 %v784, %v775
    %v786 = vand.u32 %v763, 65535
    %v787 = vshrl.u32 %v763, 16
    %v788 = vand.u32 %v758, 65535
    %v789 = vshrl.u32 %v758, 16
    %v790 = vmul.u32 %v786, %v788
    %v791 = vmul.u32 %v786, %v789
    %v792 = vmul.u32 %v787, %v788
    %v793 = vmul.u32 %v787, %v789
    %v794 = vshll.u32 %v791, 16
    %v795 = vshrl.u32 %v791, 16
    %v796 = vshll.u32 %v792, 16
    %v797 = vshrl.u32 %v792, 16
    %vm798 = vc.u32 %v790, %v794
    %v799 = vsel %vm798, 1, 0
    %v800 = vadd.s32 %v790, %v794
    %v801 = vadd.s32 %v793, %v799
    %vm802 = vc.u32 %v800, %v796
    %v803 = vsel %vm802, 1, 0
    %v804 = vadd.s32 %v800, %v796
    %v805 = vadd.s32 %v801, %v803
    %v806 = vadd.s32 %v805, %v795
    %v807 = vadd.s32 %v806, %v797
    %v808 = vmul.u32 %v763, %v754
    %v809 = vadd.s32 %v785, %v804
    %vm810 = vc.u32 %v785, %v804
    %v811 = vadd.s32 %v807, 1
    %v812 = vsel %vm810, %v811, %v807
    %v813 = vadd.s32 %v808, %v812
    %v814 = vadd.s32 %v813, 536870912
    %v815 = vshrl.u32 %v814, 30
    %v816 = vshll.u32 %v815, 30
    %v817 = vsub.s32 %v813, %v816
    %vm818 = vcmp.lt.s32.totalorder %v817, 0
    %v819 = vsub.s32 0, %v817
    %v820 = vsel %vm818, %v819, %v817
    %v821 = vclz %v820
    %v822 = vsub.s32 %v821, 2
    %vm823 = vcmp.gt.s32.totalorder 0, %v822
    %v824 = vsel %vm823, 0, %v822
    %v825 = vsub.s32 32, %v824
    %v826 = vshll.u32 %v817, %v824
    %v827 = vshrl.u32 %v809, %v825
    %v828 = vor.u32 %v826, %v827
    %v829 = vsub.s32 4294967266, %v824
    %v830 = vadd.s32 %v829, 127
    %v831 = vshll.u32 %v830, 23
    %v832 = vor.u32 4788187, %v831
    %v833 = vand.u32 2147483647, %v832
    %v835 = vcvt.s32.f32 %v828
    %v836 = vmul.f32 %v835, %v833
    %v837 = vxor.u32 %v836, 2147483648
    %v838 = vsel %vm717, %v837, %v836
    %v839 = vsub.s32 4, %v815
    %v840 = vsel %vm717, %v839, %v815
    %v841 = vsel %vm716, %v714, %v838
    %v842 = vsel %vm716, 0, %v840
    %v843 = vmul.f32 %v841, %v841
    %v844 = vmul.f32 %v843, -0.001358992
    %v845 = vadd.f32 %v844, 0.041655596
    %v846 = vmul.f32 %v843, %v845
    %v847 = vadd.f32 %v846, -0.4999988
    %v848 = vmul.f32 %v843, %v847
    %v849 = vadd.f32 1.0, %v848
    %v850 = vmul.f32 %v841, %v841
    %v851 = vmul.f32 %v850, -0.00019511016
    %v852 = vadd.f32 %v851, 0.008332121
    %v853 = vmul.f32 %v850, %v852
    %v854 = vadd.f32 %v853, -0.16666654
    %v855 = vmul.f32 %v850, %v854
    %v856 = vadd.f32 %v855, 1.0
    %v857 = vmul.f32 %v856, %v841
    %vm858 = vweird.f32 %v714
    %v859 = vand.u32 %v842, 3
    %vm860 = vcmp.lt.s32.totalorder %v859, 2
    %vm861 = vcmp.eq.s32.totalorder %v859, 0
    %v862 = vxor.u32 %v857, 2147483648
    %v863 = vsel %vm861, %v849, %v862
    %vm864 = vcmp.eq.s32.totalorder %v859, 2
    %v865 = vxor.u32 %v849, 2147483648
    %v866 = vsel %vm864, %v865, %v857
    %v867 = vsel %vm860, %v863, %v866
    %v868 = vsel %vm858, nan, %v867
    %v869 = vand.u32 2147483647, %v714
    %vm870 = vcmp.le.f32.partialorder %v869, 0.7853982
    %vm871 = vcmp.lt.s32.totalorder %v714, 0
    %v872 = vand.u32 %v714, 2139095040
    %v873 = vshrl.u32 %v872, 23
    %v874 = vsub.s32 %v873, 127
    %v875 = vand.u32 2147483647, %v714
    %v876 = vand.u32 %v875, 8388607
    %v877 = vor.u32 %v876, 8388608
    %v878 = vsub.s32 0, %v877
    %v879 = vadd.s32 %v874, 1
    %vm880 = vcmp.gt.s32.totalorder %v879, 0
    %v881 = vsel %vm880, %v879, 0
    %v882 = vshrl.u32 %v881, 5
    %v883 = vand.u32 %v881, 31
    %v884 = vsub.s32 32, %v883
    %v885 = vshrl.u32 683565275, %v884
    %v886 = vshll.u32 683565275, %v883
    %v887 = vshrl.u32 2475754826, %v884
    %v888 = vor.u32 %v886, %v887
    %v889 = vshll.u32 2475754826, %v883
    %v890 = vshrl.u32 2131351028, %v884
    %v891 = vor.u32 %v889, %v890
    %v892 = vshll.u32 2131351028, %v883
    %v893 = vshrl.u32 2102212464, %v884
    %v894 = vor.u32 %v892, %v893
    %v895 = vshll.u32 2102212464, %v883
    %v896 = vshrl.u32 920167782, %v884
    %v897 = vor.u32 %v895, %v896
    %v898 = vshll.u32 920167782, %v883
    %v899 = vshrl.u32 1326507024, %v884
    %v900 = vor.u32 %v898, %v899
    %vm901 = vcmp.lt.s32.totalorder %v882, 1
    %vm902 = vcmp.lt.s32.totalorder %v882, 2
    %vm903 = vcmp.lt.s32.totalorder %v882, 3
    %vm904 = vcmp.lt.s32.totalorder %v882, 4
    %v905 = vsel %vm901, %v885, %v888
    %v906 = vsel %vm904, %v894, 2102212464
    %v907 = vsel %vm903, %v891, %v906
    %v908 = vsel %vm902, %v905, %v907
    %v909 = vsel %vm901, %v888, %v891
    %v910 = vsel %vm904, %v897, 920167782
    %v911 = vsel %vm903, %v894, %v910
    %v912 = vsel %vm902, %v909, %v911
    %v913 = vsel %vm901, %v891, %v894
    %v914 = vsel %vm904, %v900, 1326507024
    %v915 = vsel %vm903, %v897, %v914
    %v916 = vsel %vm902, %v913, %v915
    %v917 = vshll.u32 %v877, 8
    %v918 = vand.u32 %v917, 65535
    %v919 = vshrl.u32 %v917, 16
    %v920 = vand.u32 %v916, 65535
    %v921 = vshrl.u32 %v916, 16
    %v922 = vmul.u32 %v918, %v920
    %v923 = vmul.u32 %v918, %v921
    %v924 = vmul.u32 %v919, %v920
    %v925 = vmul.u32 %v919, %v921
    %v926 = vshll.u32 %v923, 16
    %v927 = vshrl.u32 %v923, 16
    %v928 = vshll.u32 %v924, 16
    %v929 = vshrl.u32 %v924, 16
    %vm930 = vc.u32 %v922, %v926
    %v931 = vsel %vm930, 1, 0
    %v932 = vadd.s32 %v922, %v926
    %v933 = vadd.s32 %v925, %v931
    %vm934 = vc.u32 %v932, %v928
    %v935 = vsel %vm934, 1, 0
    %v936 = vadd.s32 %v932, %v928
    %v937 = vadd.s32 %v933, %v935
    %v938 = vadd.s32 %v937, %v927
    %v939 = vadd.s32 %v938, %v929
    %v940 = vand.u32 %v917, 65535
    %v941 = vshrl.u32 %v917, 16
    %v942 = vand.u32 %v912, 65535
    %v943 = vshrl.u32 %v912, 16
    %v944 = vmul.u32 %v940, %v942
    %v945 = vmul.u32 %v940, %v943
    %v946 = vmul.u32 %v941, %v942
    %v947 = vmul.u32 %v941, %v943
    %v948 = vshll.u32 %v945, 16
    %v949 = vshrl.u32 %v945, 16
    %v950 = vshll.u32 %v946, 16
    %v951 = vshrl.u32 %v946, 16
    %vm952 = vc.u32 %v944, %v948
    %v953 = vsel %vm952, 1, 0
    %v954 = vadd.s32 %v944, %v948
    %v955 = vadd.s32 %v947, %v953
    %vm956 = vc.u32 %v954, %v950
    %v957 = vsel %vm956, 1, 0
    %v958 = vadd.s32 %v954, %v950
    %v959 = vadd.s32 %v955, %v957
    %v960 = vadd.s32 %v959, %v949
    %v961 = vadd.s32 %v960, %v951
    %v962 = vmul.u32 %v917, %v908
    %v963 = vadd.s32 %v939, %v958
    %vm964 = vc.u32 %v939, %v958
    %v965 = vadd.s32 %v961, 1
    %v966 = vsel %vm964, %v965, %v961
    %v967 = vadd.s32 %v962, %v966
    %v968 = vadd.s32 %v967, 536870912
    %v969 = vshrl.u32 %v968, 30
    %v970 = vshll.u32 %v969, 30
    %v971 = vsub.s32 %v967, %v970
    %vm972 = vcmp.lt.s32.totalorder %v971, 0
    %v973 = vsub.s32 0, %v971
    %v974 = vsel %vm972, %v973, %v971
    %v975 = vclz %v974
    %v976 = vsub.s32 %v975, 2
    %vm977 = vcmp.gt.s32.totalorder 0, %v976
    %v978 = vsel %vm977, 0, %v976
    %v979 = vsub.s32 32, %v978
    %v980 = vshll.u32 %v971, %v978
    %v981 = vshrl.u32 %v963, %v979
    %v982 = vor.u32 %v980, %v981
    %v983 = vsub.s32 4294967266, %v978
    %v984 = vadd.s32 %v983, 127
    %v985 = vshll.u32 %v984, 23
    %v986 = vor.u32 4788187, %v985
    %v987 = vand.u32 2147483647, %v986
    %v989 = vcvt.s32.f32 %v982
    %v990 = vmul.f32 %v989, %v987
    %v991 = vxor.u32 %v990, 2147483648
    %v992 = vsel %vm871, %v991, %v990
    %v993 = vsub.s32 4, %v969
    %v994 = vsel %vm871, %v993, %v969
    %v995 = vsel %vm870, %v714, %v992
    %v996 = vsel %vm870, 0, %v994
    %v997 = vmul.f32 %v995, %v995
    %v998 = vmul.f32 %v997, -0.001358992
    %v999 = vadd.f32 %v998, 0.041655596
    %v1000 = vmul.f32 %v997, %v999
    %v1001 = vadd.f32 %v1000, -0.4999988
    %v1002 = vmul.f32 %v997, %v1001
    %v1003 = vadd.f32 1.0, %v1002
    %v1004 = vmul.f32 %v995, %v995
    %v1005 = vmul.f32 %v1004, -0.00019511016
    %v1006 = vadd.f32 %v1005, 0.008332121
    %v1007 = vmul.f32 %v1004, %v1006
    %v1008 = vadd.f32 %v1007, -0.16666654
    %v1009 = vmul.f32 %v1004, %v1008
    %v1010 = vadd.f32 %v1009, 1.0
    %v1011 = vmul.f32 %v1010, %v995
    %vm1012 = vweird.f32 %v714
    %v1013 = vadd.s32 %v996, 3
    %v1014 = vand.u32 %v1013, 3
    %vm1015 = vcmp.lt.s32.totalorder %v1014, 2
    %vm1016 = vcmp.eq.s32.totalorder %v1014, 0
    %v1017 = vxor.u32 %v1011, 2147483648
    %v1018 = vsel %vm1016, %v1003, %v1017
    %vm1019 = vcmp.eq.s32.totalorder %v1014, 2
    %v1020 = vxor.u32 %v1003, 2147483648
    %v1021 = vsel %vm1019, %v1020, %v1011
    %v1022 = vsel %vm1015, %v1018, %v1021
    %v1023 = vsel %vm1012, nan, %v1022
    %1025 = vrot.lane.b32.xlu0 %v868, 16
    %v1026 = vpop.permute.xlu0 %1025
    %v1028 = vsel %vm351, %v868, %v1026
    %1030 = vrot.lane.b32.xlu0 %v1023, 16
    %v1031 = vpop.permute.xlu0 %1030
    %v1033 = vsel %vm351, %v1023, %v1031
    %1035 = vrot.lane.b32.xlu0 %v1028, 64
    %v1036 = vpop.permute.xlu0 %1035
    %1038 = vst.msk [vmem:[#allocation5 + $0x2] sm:$0x3] %vm366, %v1036
    %1039 = vrot.lane.b32.xlu0 %v1028, 96
    %v1040 = vpop.permute.xlu0 %1039
    %1042 = vst.msk [vmem:[#allocation5 + $0x2] sm:$0x3] %vm701, %v1040
    %1043 = vst.msk [vmem:[#allocation5 + $0x4] sm:$0x3] %vm358, 1.0
    %1045 = vrot.lane.b32.xlu0 %v1033, 64
    %v1046 = vpop.permute.xlu0 %1045
    %1048 = vst.msk [vmem:[#allocation6 + $0x2] sm:$0x3] %vm366, %v1046
    %1049 = vrot.lane.b32.xlu0 %v1033, 96
    %v1050 = vpop.permute.xlu0 %1049
    %1052 = vst.msk [vmem:[#allocation6 + $0x2] sm:$0x3] %vm701, %v1050
    %1053 = vst.msk [vmem:[#allocation6 + $0x4] sm:$0x3] %vm358, 0.0
    %v1054 = vadd.s32 %v32, 3
    %v1055 = vcvt.s32.f32 %v1054
    %v1056 = vmul.f32 %v1055, %v35
    %v1057 = vand.u32 2147483647, %v1056
    %vm1058 = vcmp.le.f32.partialorder %v1057, 0.7853982
    %vm1059 = vcmp.lt.s32.totalorder %v1056, 0
    %v1060 = vand.u32 %v1056, 2139095040
    %v1061 = vshrl.u32 %v1060, 23
    %v1062 = vsub.s32 %v1061, 127
    %v1063 = vand.u32 2147483647, %v1056
    %v1064 = vand.u32 %v1063, 8388607
    %v1065 = vor.u32 %v1064, 8388608
    %v1066 = vsub.s32 0, %v1065
    %v1067 = vadd.s32 %v1062, 1
    %vm1068 = vcmp.gt.s32.totalorder %v1067, 0
    %v1069 = vsel %vm1068, %v1067, 0
    %v1070 = vshrl.u32 %v1069, 5
    %v1071 = vand.u32 %v1069, 31
    %v1072 = vsub.s32 32, %v1071
    %v1073 = vshrl.u32 683565275, %v1072
    %v1074 = vshll.u32 683565275, %v1071
    %v1075 = vshrl.u32 2475754826, %v1072
    %v1076 = vor.u32 %v1074, %v1075
    %v1077 = vshll.u32 2475754826, %v1071
    %v1078 = vshrl.u32 2131351028, %v1072
    %v1079 = vor.u32 %v1077, %v1078
    %v1080 = vshll.u32 2131351028, %v1071
    %v1081 = vshrl.u32 2102212464, %v1072
    %v1082 = vor.u32 %v1080, %v1081
    %v1083 = vshll.u32 2102212464, %v1071
    %v1084 = vshrl.u32 920167782, %v1072
    %v1085 = vor.u32 %v1083, %v1084
    %v1086 = vshll.u32 920167782, %v1071
    %v1087 = vshrl.u32 1326507024, %v1072
    %v1088 = vor.u32 %v1086, %v1087
    %vm1089 = vcmp.lt.s32.totalorder %v1070, 1
    %vm1090 = vcmp.lt.s32.totalorder %v1070, 2
    %vm1091 = vcmp.lt.s32.totalorder %v1070, 3
    %vm1092 = vcmp.lt.s32.totalorder %v1070, 4
    %v1093 = vsel %vm1089, %v1073, %v1076
    %v1094 = vsel %vm1092, %v1082, 2102212464
    %v1095 = vsel %vm1091, %v1079, %v1094
    %v1096 = vsel %vm1090, %v1093, %v1095
    %v1097 = vsel %vm1089, %v1076, %v1079
    %v1098 = vsel %vm1092, %v1085, 920167782
    %v1099 = vsel %vm1091, %v1082, %v1098
    %v1100 = vsel %vm1090, %v1097, %v1099
    %v1101 = vsel %vm1089, %v1079, %v1082
    %v1102 = vsel %vm1092, %v1088, 1326507024
    %v1103 = vsel %vm1091, %v1085, %v1102
    %v1104 = vsel %vm1090, %v1101, %v1103
    %v1105 = vshll.u32 %v1065, 8
    %v1106 = vand.u32 %v1105, 65535
    %v1107 = vshrl.u32 %v1105, 16
    %v1108 = vand.u32 %v1104, 65535
    %v1109 = vshrl.u32 %v1104, 16
    %v1110 = vmul.u32 %v1106, %v1108
    %v1111 = vmul.u32 %v1106, %v1109
    %v1112 = vmul.u32 %v1107, %v1108
    %v1113 = vmul.u32 %v1107, %v1109
    %v1114 = vshll.u32 %v1111, 16
    %v1115 = vshrl.u32 %v1111, 16
    %v1116 = vshll.u32 %v1112, 16
    %v1117 = vshrl.u32 %v1112, 16
    %vm1118 = vc.u32 %v1110, %v1114
    %v1119 = vsel %vm1118, 1, 0
    %v1120 = vadd.s32 %v1110, %v1114
    %v1121 = vadd.s32 %v1113, %v1119
    %vm1122 = vc.u32 %v1120, %v1116
    %v1123 = vsel %vm1122, 1, 0
    %v1124 = vadd.s32 %v1120, %v1116
    %v1125 = vadd.s32 %v1121, %v1123
    %v1126 = vadd.s32 %v1125, %v1115
    %v1127 = vadd.s32 %v1126, %v1117
    %v1128 = vand.u32 %v1105, 65535
    %v1129 = vshrl.u32 %v1105, 16
    %v1130 = vand.u32 %v1100, 65535
    %v1131 = vshrl.u32 %v1100, 16
    %v1132 = vmul.u32 %v1128, %v1130
    %v1133 = vmul.u32 %v1128, %v1131
    %v1134 = vmul.u32 %v1129, %v1130
    %v1135 = vmul.u32 %v1129, %v1131
    %v1136 = vshll.u32 %v1133, 16
    %v1137 = vshrl.u32 %v1133, 16
    %v1138 = vshll.u32 %v1134, 16
    %v1139 = vshrl.u32 %v1134, 16
    %vm1140 = vc.u32 %v1132, %v1136
    %v1141 = vsel %vm1140, 1, 0
    %v1142 = vadd.s32 %v1132, %v1136
    %v1143 = vadd.s32 %v1135, %v1141
    %vm1144 = vc.u32 %v1142, %v1138
    %v1145 = vsel %vm1144, 1, 0
    %v1146 = vadd.s32 %v1142, %v1138
    %v1147 = vadd.s32 %v1143, %v1145
    %v1148 = vadd.s32 %v1147, %v1137
    %v1149 = vadd.s32 %v1148, %v1139
    %v1150 = vmul.u32 %v1105, %v1096
    %v1151 = vadd.s32 %v1127, %v1146
    %vm1152 = vc.u32 %v1127, %v1146
    %v1153 = vadd.s32 %v1149, 1
    %v1154 = vsel %vm1152, %v1153, %v1149
    %v1155 = vadd.s32 %v1150, %v1154
    %v1156 = vadd.s32 %v1155, 536870912
    %v1157 = vshrl.u32 %v1156, 30
    %v1158 = vshll.u32 %v1157, 30
    %v1159 = vsub.s32 %v1155, %v1158
    %vm1160 = vcmp.lt.s32.totalorder %v1159, 0
    %v1161 = vsub.s32 0, %v1159
    %v1162 = vsel %vm1160, %v1161, %v1159
    %v1163 = vclz %v1162
    %v1164 = vsub.s32 %v1163, 2
    %vm1165 = vcmp.gt.s32.totalorder 0, %v1164
    %v1166 = vsel %vm1165, 0, %v1164
    %v1167 = vsub.s32 32, %v1166
    %v1168 = vshll.u32 %v1159, %v1166
    %v1169 = vshrl.u32 %v1151, %v1167
    %v1170 = vor.u32 %v1168, %v1169
    %v1171 = vsub.s32 4294967266, %v1166
    %v1172 = vadd.s32 %v1171, 127
    %v1173 = vshll.u32 %v1172, 23
    %v1174 = vor.u32 4788187, %v1173
    %v1175 = vand.u32 2147483647, %v1174
    %v1177 = vcvt.s32.f32 %v1170
    %v1178 = vmul.f32 %v1177, %v1175
    %v1179 = vxor.u32 %v1178, 2147483648
    %v1180 = vsel %vm1059, %v1179, %v1178
    %v1181 = vsub.s32 4, %v1157
    %v1182 = vsel %vm1059, %v1181, %v1157
    %v1183 = vsel %vm1058, %v1056, %v1180
    %v1184 = vsel %vm1058, 0, %v1182
    %v1185 = vmul.f32 %v1183, %v1183
    %v1186 = vmul.f32 %v1185, -0.001358992
    %v1187 = vadd.f32 %v1186, 0.041655596
    %v1188 = vmul.f32 %v1185, %v1187
    %v1189 = vadd.f32 %v1188, -0.4999988
    %v1190 = vmul.f32 %v1185, %v1189
    %v1191 = vadd.f32 1.0, %v1190
    %v1192 = vmul.f32 %v1183, %v1183
    %v1193 = vmul.f32 %v1192, -0.00019511016
    %v1194 = vadd.f32 %v1193, 0.008332121
    %v1195 = vmul.f32 %v1192, %v1194
    %v1196 = vadd.f32 %v1195, -0.16666654
    %v1197 = vmul.f32 %v1192, %v1196
    %v1198 = vadd.f32 %v1197, 1.0
    %v1199 = vmul.f32 %v1198, %v1183
    %vm1200 = vweird.f32 %v1056
    %v1201 = vand.u32 %v1184, 3
    %vm1202 = vcmp.lt.s32.totalorder %v1201, 2
    %vm1203 = vcmp.eq.s32.totalorder %v1201, 0
    %v1204 = vxor.u32 %v1199, 2147483648
    %v1205 = vsel %vm1203, %v1191, %v1204
    %vm1206 = vcmp.eq.s32.totalorder %v1201, 2
    %v1207 = vxor.u32 %v1191, 2147483648
    %v1208 = vsel %vm1206, %v1207, %v1199
    %v1209 = vsel %vm1202, %v1205, %v1208
    %v1210 = vsel %vm1200, nan, %v1209
    %v1211 = vand.u32 2147483647, %v1056
    %vm1212 = vcmp.le.f32.partialorder %v1211, 0.7853982
    %vm1213 = vcmp.lt.s32.totalorder %v1056, 0
    %v1214 = vand.u32 %v1056, 2139095040
    %v1215 = vshrl.u32 %v1214, 23
    %v1216 = vsub.s32 %v1215, 127
    %v1217 = vand.u32 2147483647, %v1056
    %v1218 = vand.u32 %v1217, 8388607
    %v1219 = vor.u32 %v1218, 8388608
    %v1220 = vsub.s32 0, %v1219
    %v1221 = vadd.s32 %v1216, 1
    %vm1222 = vcmp.gt.s32.totalorder %v1221, 0
    %v1223 = vsel %vm1222, %v1221, 0
    %v1224 = vshrl.u32 %v1223, 5
    %v1225 = vand.u32 %v1223, 31
    %v1226 = vsub.s32 32, %v1225
    %v1227 = vshrl.u32 683565275, %v1226
    %v1228 = vshll.u32 683565275, %v1225
    %v1229 = vshrl.u32 2475754826, %v1226
    %v1230 = vor.u32 %v1228, %v1229
    %v1231 = vshll.u32 2475754826, %v1225
    %v1232 = vshrl.u32 2131351028, %v1226
    %v1233 = vor.u32 %v1231, %v1232
    %v1234 = vshll.u32 2131351028, %v1225
    %v1235 = vshrl.u32 2102212464, %v1226
    %v1236 = vor.u32 %v1234, %v1235
    %v1237 = vshll.u32 2102212464, %v1225
    %v1238 = vshrl.u32 920167782, %v1226
    %v1239 = vor.u32 %v1237, %v1238
    %v1240 = vshll.u32 920167782, %v1225
    %v1241 = vshrl.u32 1326507024, %v1226
    %v1242 = vor.u32 %v1240, %v1241
    %vm1243 = vcmp.lt.s32.totalorder %v1224, 1
    %vm1244 = vcmp.lt.s32.totalorder %v1224, 2
    %vm1245 = vcmp.lt.s32.totalorder %v1224, 3
    %vm1246 = vcmp.lt.s32.totalorder %v1224, 4
    %v1247 = vsel %vm1243, %v1227, %v1230
    %v1248 = vsel %vm1246, %v1236, 2102212464
    %v1249 = vsel %vm1245, %v1233, %v1248
    %v1250 = vsel %vm1244, %v1247, %v1249
    %v1251 = vsel %vm1243, %v1230, %v1233
    %v1252 = vsel %vm1246, %v1239, 920167782
    %v1253 = vsel %vm1245, %v1236, %v1252
    %v1254 = vsel %vm1244, %v1251, %v1253
    %v1255 = vsel %vm1243, %v1233, %v1236
    %v1256 = vsel %vm1246, %v1242, 1326507024
    %v1257 = vsel %vm1245, %v1239, %v1256
    %v1258 = vsel %vm1244, %v1255, %v1257
    %v1259 = vshll.u32 %v1219, 8
    %v1260 = vand.u32 %v1259, 65535
    %v1261 = vshrl.u32 %v1259, 16
    %v1262 = vand.u32 %v1258, 65535
    %v1263 = vshrl.u32 %v1258, 16
    %v1264 = vmul.u32 %v1260, %v1262
    %v1265 = vmul.u32 %v1260, %v1263
    %v1266 = vmul.u32 %v1261, %v1262
    %v1267 = vmul.u32 %v1261, %v1263
    %v1268 = vshll.u32 %v1265, 16
    %v1269 = vshrl.u32 %v1265, 16
    %v1270 = vshll.u32 %v1266, 16
    %v1271 = vshrl.u32 %v1266, 16
    %vm1272 = vc.u32 %v1264, %v1268
    %v1273 = vsel %vm1272, 1, 0
    %v1274 = vadd.s32 %v1264, %v1268
    %v1275 = vadd.s32 %v1267, %v1273
    %vm1276 = vc.u32 %v1274, %v1270
    %v1277 = vsel %vm1276, 1, 0
    %v1278 = vadd.s32 %v1274, %v1270
    %v1279 = vadd.s32 %v1275, %v1277
    %v1280 = vadd.s32 %v1279, %v1269
    %v1281 = vadd.s32 %v1280, %v1271
    %v1282 = vand.u32 %v1259, 65535
    %v1283 = vshrl.u32 %v1259, 16
    %v1284 = vand.u32 %v1254, 65535
    %v1285 = vshrl.u32 %v1254, 16
    %v1286 = vmul.u32 %v1282, %v1284
    %v1287 = vmul.u32 %v1282, %v1285
    %v1288 = vmul.u32 %v1283, %v1284
    %v1289 = vmul.u32 %v1283, %v1285
    %v1290 = vshll.u32 %v1287, 16
    %v1291 = vshrl.u32 %v1287, 16
    %v1292 = vshll.u32 %v1288, 16
    %v1293 = vshrl.u32 %v1288, 16
    %vm1294 = vc.u32 %v1286, %v1290
    %v1295 = vsel %vm1294, 1, 0
    %v1296 = vadd.s32 %v1286, %v1290
    %v1297 = vadd.s32 %v1289, %v1295
    %vm1298 = vc.u32 %v1296, %v1292
    %v1299 = vsel %vm1298, 1, 0
    %v1300 = vadd.s32 %v1296, %v1292
    %v1301 = vadd.s32 %v1297, %v1299
    %v1302 = vadd.s32 %v1301, %v1291
    %v1303 = vadd.s32 %v1302, %v1293
    %v1304 = vmul.u32 %v1259, %v1250
    %v1305 = vadd.s32 %v1281, %v1300
    %vm1306 = vc.u32 %v1281, %v1300
    %v1307 = vadd.s32 %v1303, 1
    %v1308 = vsel %vm1306, %v1307, %v1303
    %v1309 = vadd.s32 %v1304, %v1308
    %v1310 = vadd.s32 %v1309, 536870912
    %v1311 = vshrl.u32 %v1310, 30
    %v1312 = vshll.u32 %v1311, 30
    %v1313 = vsub.s32 %v1309, %v1312
    %vm1314 = vcmp.lt.s32.totalorder %v1313, 0
    %v1315 = vsub.s32 0, %v1313
    %v1316 = vsel %vm1314, %v1315, %v1313
    %v1317 = vclz %v1316
    %v1318 = vsub.s32 %v1317, 2
    %vm1319 = vcmp.gt.s32.totalorder 0, %v1318
    %v1320 = vsel %vm1319, 0, %v1318
    %v1321 = vsub.s32 32, %v1320
    %v1322 = vshll.u32 %v1313, %v1320
    %v1323 = vshrl.u32 %v1305, %v1321
    %v1324 = vor.u32 %v1322, %v1323
    %v1325 = vsub.s32 4294967266, %v1320
    %v1326 = vadd.s32 %v1325, 127
    %v1327 = vshll.u32 %v1326, 23
    %v1328 = vor.u32 4788187, %v1327
    %v1329 = vand.u32 2147483647, %v1328
    %v1331 = vcvt.s32.f32 %v1324
    %v1332 = vmul.f32 %v1331, %v1329
    %v1333 = vxor.u32 %v1332, 2147483648
    %v1334 = vsel %vm1213, %v1333, %v1332
    %v1335 = vsub.s32 4, %v1311
    %v1336 = vsel %vm1213, %v1335, %v1311
    %v1337 = vsel %vm1212, %v1056, %v1334
    %v1338 = vsel %vm1212, 0, %v1336
    %v1339 = vmul.f32 %v1337, %v1337
    %v1340 = vmul.f32 %v1339, -0.001358992
    %v1341 = vadd.f32 %v1340, 0.041655596
    %v1342 = vmul.f32 %v1339, %v1341
    %v1343 = vadd.f32 %v1342, -0.4999988
    %v1344 = vmul.f32 %v1339, %v1343
    %v1345 = vadd.f32 1.0, %v1344
    %v1346 = vmul.f32 %v1337, %v1337
    %v1347 = vmul.f32 %v1346, -0.00019511016
    %v1348 = vadd.f32 %v1347, 0.008332121
    %v1349 = vmul.f32 %v1346, %v1348
    %v1350 = vadd.f32 %v1349, -0.16666654
    %v1351 = vmul.f32 %v1346, %v1350
    %v1352 = vadd.f32 %v1351, 1.0
    %v1353 = vmul.f32 %v1352, %v1337
    %vm1354 = vweird.f32 %v1056
    %v1355 = vadd.s32 %v1338, 3
    %v1356 = vand.u32 %v1355, 3
    %vm1357 = vcmp.lt.s32.totalorder %v1356, 2
    %vm1358 = vcmp.eq.s32.totalorder %v1356, 0
    %v1359 = vxor.u32 %v1353, 2147483648
    %v1360 = vsel %vm1358, %v1345, %v1359
    %vm1361 = vcmp.eq.s32.totalorder %v1356, 2
    %v1362 = vxor.u32 %v1345, 2147483648
    %v1363 = vsel %vm1361, %v1362, %v1353
    %v1364 = vsel %vm1357, %v1360, %v1363
    %v1365 = vsel %vm1354, nan, %v1364
    %1367 = vrot.lane.b32.xlu0 %v1210, 16
    %v1368 = vpop.permute.xlu0 %1367
    %v1370 = vsel %vm351, %v1210, %v1368
    %1372 = vrot.lane.b32.xlu0 %v1365, 16
    %v1373 = vpop.permute.xlu0 %1372
    %v1375 = vsel %vm351, %v1365, %v1373
    %1377 = vrot.lane.b32.xlu0 %v1370, 32
    %v1378 = vpop.permute.xlu0 %1377
    %1380 = vst.msk [vmem:[#allocation5 + $0x4] sm:$0x3] %vm364, %v1378
    %1381 = vrot.lane.b32.xlu0 %v1370, 64
    %v1382 = vpop.permute.xlu0 %1381
    %1384 = vst.msk [vmem:[#allocation5 + $0x4] sm:$0x3] %vm366, %v1382
    %1385 = vst.msk [vmem:[#allocation5 + $0x4] sm:$0x3] %vm701, 1.0
    %1387 = vrot.lane.b32.xlu0 %v1375, 32
    %v1388 = vpop.permute.xlu0 %1387
    %1390 = vst.msk [vmem:[#allocation6 + $0x4] sm:$0x3] %vm364, %v1388
    %1391 = vrot.lane.b32.xlu0 %v1375, 64
    %v1392 = vpop.permute.xlu0 %1391
    %1394 = vst.msk [vmem:[#allocation6 + $0x4] sm:$0x3] %vm366, %v1392
    %1395 = vst.msk [vmem:[#allocation6 + $0x4] sm:$0x3] %vm701, 0.0
    // Predicated region
    $region10: #{tpu_custom_call.1} parent=1 // pred_check
      _
    $region11: #{tpu_custom_call.1} parent=1 // pred_check_branch
      %1397 = sbr.rel (0) target = $region13
    $region12: #{tpu_custom_call.1} parent=1 // pred_region
      %1399 = vsyncadd [#allocation4], 0
      %s1401 = sshll.u32 [#allocation5], 4
      %s1402 = int_to_ptr.vmem [resolvable:$true] %s1401
      %s1403 = sshll.u32 %s1, 4
      %s1404 = int_to_ptr.hbm [resolvable:$true] %s1403
      %1406 = dma.vmem_to_hbm [thread:$0]  %s1402, 96, %s1404, [#allocation4]
    $region13: #{tpu_custom_call.1} parent=1 // pred_fallthru
      _
    // Predicated region
    $region14: #{tpu_custom_call.1} parent=1 // pred_check
      _
    $region15: #{tpu_custom_call.1} parent=1 // pred_check_branch
      %1408 = sbr.rel (0) target = $region17
    $region16: #{tpu_custom_call.1} parent=1 // pred_region
      %1410 = vsyncadd [#allocation7], 0
      %s1412 = sshll.u32 [#allocation6], 4
      %s1413 = int_to_ptr.vmem [resolvable:$true] %s1412
      %s1414 = sshll.u32 %s2, 4
      %s1415 = int_to_ptr.hbm [resolvable:$true] %s1414
      %1417 = dma.vmem_to_hbm [thread:$0]  %s1413, 96, %s1415, [#allocation7]
    $region17: #{tpu_custom_call.1} parent=1 // pred_fallthru
      _
    // Predicated region
    $region18: #{tpu_custom_call.1} parent=1 // pred_check
      _
    $region19: #{tpu_custom_call.1} parent=1 // pred_check_branch
      %1419 = sbr.rel (0) target = $region21
    $region20: #{tpu_custom_call.1} parent=1 // pred_region
      %1421 = dma.done [#allocation4], 96
    $region21: #{tpu_custom_call.1} parent=1 // pred_fallthru
      _
    // Predicated region
    $region22: #{tpu_custom_call.1} parent=1 // pred_check
      _
    $region23: #{tpu_custom_call.1} parent=1 // pred_check_branch
      %1423 = sbr.rel (0) target = $region25
    $region24: #{tpu_custom_call.1} parent=1 // pred_region
      %1425 = dma.done [#allocation7], 96
    $region25: #{tpu_custom_call.1} parent=1 // pred_fallthru
      _
    %1426 = vsyncpa [#allocation3], 1
    %1427 = vsyncpa [#allocation4], 1
    %1428 = vsyncpa [#allocation7], 1

</llo_original>
